<compile_context>
chip_gen: v5e
topology: v5e:2x2
jax: 0.10.0
libtpu: 0.0.40
codegen_flags: <defaults>
</compile_context>

<pallas_src>
import functools

import jax
import jax.numpy as jnp
from jax import lax
from jax.experimental import pallas as pl
from jax.experimental.pallas import tpu as pltpu


def film_kernel(x_ref, cond_ref, w1_ref, b1_ref, ln_g_ref, ln_b_ref,
                w2_ref, b2_ref, out_ref, *, f_pad, mxu_bf16):
    # ----- Linear 1: (TB, C) @ (C, H) + (1, H); inputs possibly bf16 (cast in
    # the wrapper, not here), accumulate in f32 on the MXU. -----
    h = jnp.dot(cond_ref[...], w1_ref[...],
                preferred_element_type=jnp.float32) + b1_ref[...]

    # ----- LayerNorm over last dim (eps = 1e-5, PyTorch default), f32 stats -----
    mean = jnp.mean(h, axis=-1, keepdims=True)
    centered = h - mean
    var = jnp.mean(centered * centered, axis=-1, keepdims=True)
    inv = lax.rsqrt(var + 1e-5)                       # EUP; free vs the VALU slot
    h = centered * (inv * ln_g_ref[...]) + ln_b_ref[...]

    # ----- ReLU -----
    h = jnp.maximum(h, 0.0)

    # ----- Linear 2: single fused (TB, 2*Fp) matmul; Fp is a multiple of 128
    # so the gamma/beta split is a lane-group-aligned slice (no relayout). -----
    if mxu_bf16:
        h = h.astype(jnp.bfloat16)   # only in-kernel cast left (h is produced here)
    film = jnp.dot(h, w2_ref[...], preferred_element_type=jnp.float32) + b2_ref[...]
    gamma = film[:, :f_pad]
    beta = film[:, f_pad:]

    # ----- FiLM: (1 + gamma) * x + beta == x + (gamma * x + beta) -----
    x = x_ref[...].astype(jnp.float32)
    out_ref[...] = (x + (gamma * x + beta)).astype(out_ref.dtype)


def _vmem_limit_bytes(tb, C, H, Fp, act_bytes, w_bytes, out_bytes):
    f32 = 4
    # Resident weights/biases: Mosaic still allocates 2 buffers for constant
    # index_map blocks by default, so count them twice.
    weights = 2 * (C * H * w_bytes + H * 2 * Fp * w_bytes
                   + 3 * H * f32 + 2 * Fp * f32)
    # Streamed activation tiles (x, condition, out), double-buffered.
    streamed = 2 * tb * (Fp * act_bytes + C * act_bytes + Fp * out_bytes)
    # Kernel-local f32 temporaries: h/centered (H-wide), film/gamma*x+beta (2Fp-wide).
    temps = tb * (3 * H + 4 * Fp) * f32
    est = weights + streamed + temps
    try:
        phys = pltpu.get_tpu_info().vmem_capacity_bytes
    except Exception:
        phys = 64 * 2 ** 20               # v7x per-TC physical VMEM
    cap = int(phys * 3 // 4)              # headroom for Mosaic internal scratch
    return int(min(max(2 * est, 8 * 2 ** 20), cap))


def film_layer(x, condition, w1, b1, ln_g, ln_b, w2, b2,
               *, block_batch=1024, mxu_bf16=False):
    """FiLM forward.  Shapes: x (B, F), condition (B, C), w1 (C, H), b1 (1, H),
    ln_g/ln_b (1, H), w2 (H, 2F), b2 (1, 2F)."""
    B, F = x.shape
    C, H = w1.shape
    assert condition.shape == (B, C)
    assert w2.shape == (H, 2 * F) and b2.shape == (1, 2 * F)

    # ---- Lane-dense feature padding: F -> Fp (multiple of 128). Pad each
    # gamma/beta half of w2/b2 independently, then concatenate so the split
    # point inside the kernel is 128-aligned. Padded columns are zero so they
    # produce zeros in the (discarded) padded output columns. ----
    Fp = -(-F // 128) * 128
    pad = Fp - F
    if pad:
        x_p = jnp.pad(x, ((0, 0), (0, pad)))
        w2f = jnp.concatenate(
            [jnp.pad(w2[:, :F], ((0, 0), (0, pad))),
             jnp.pad(w2[:, F:], ((0, 0), (0, pad)))], axis=1)
        b2f = jnp.concatenate(
            [jnp.pad(b2[:, :F], ((0, 0), (0, pad))),
             jnp.pad(b2[:, F:], ((0, 0), (0, pad)))], axis=1)
    else:
        x_p, w2f, b2f = x, w2, b2

    # ---- bf16 casts happen HBM-side (halves streamed bytes and weight VMEM);
    # biases / LN params / all in-kernel math stay f32. ----
    out_dtype = x.dtype
    cond_p = condition
    if mxu_bf16:
        x_p = x_p.astype(jnp.bfloat16)
        cond_p = condition.astype(jnp.bfloat16)
        w1 = w1.astype(jnp.bfloat16)
        w2f = w2f.astype(jnp.bfloat16)
        out_dtype = jnp.bfloat16          # keep writeback at half the HBM bytes

    # ---- Batch tile: large (amortizes ~0.35us/step), sublane-aligned, and the
    # grid length is kept even (>=2) when B permits so the "parallel" batch
    # axis balances across both TensorCores on v7x. ----
    tb = min(block_batch, B)
    if tb < B and tb % 8 != 0:
        tb = max(8, (tb // 8) * 8)
    n_tiles = pl.cdiv(B, tb)
    if n_tiles % 2 == 1 and B > 8:
        n_even = n_tiles + 1
        tb_even = max(8, -(-(-(-B // n_even)) // 8) * 8)   # cdiv then round up to 8
        if pl.cdiv(B, tb_even) % 2 == 0:
            tb = tb_even
            n_tiles = pl.cdiv(B, tb)
    grid = (n_tiles,)

    act = lambda last: pl.BlockSpec((tb, last), lambda i: (i, 0))      # streamed
    cst = lambda shp: pl.BlockSpec(shp, lambda i: (0, 0))              # resident
    # NOTE: for very large H*Fp weights under v7x's 64 MiB VMEM, the constant
    # weight specs could use pipeline_mode=pl.Buffered(1) to drop their second
    # buffer; negligible at these sizes, so the default is kept and the 2x is
    # accounted for in the VMEM estimate instead.

    kernel = functools.partial(film_kernel, f_pad=Fp, mxu_bf16=mxu_bf16)
    out_p = pl.pallas_call(
        kernel,
        out_shape=jax.ShapeDtypeStruct((B, Fp), out_dtype),
        grid=grid,
        in_specs=[
            act(Fp),                  # x (padded)
            act(C),                   # condition
            cst((C, H)),              # w1
            cst((1, H)),              # b1
            cst((1, H)),              # ln_g
            cst((1, H)),              # ln_b
            cst((H, 2 * Fp)),         # w2 (gamma|beta halves, each padded to Fp)
            cst((1, 2 * Fp)),         # b2 (same layout)
        ],
        out_specs=act(Fp),
        compiler_params=pltpu.CompilerParams(
            dimension_semantics=("parallel",),
            vmem_limit_bytes=_vmem_limit_bytes(
                tb, C, H, Fp,
                act_bytes=x_p.dtype.itemsize,
                w_bytes=w1.dtype.itemsize,
                out_bytes=jnp.dtype(out_dtype).itemsize),
        ),
    )(x_p, cond_p, w1, b1, ln_g, ln_b, w2f, b2f)

    return out_p[:, :F] if pad else out_p


def init_params(key, feature_dim, condition_dim, hidden_dim=None):
    hidden_dim = hidden_dim or condition_dim * 2
    k1, k2, k3, k4 = jax.random.split(key, 4)
    s1 = 1.0 / jnp.sqrt(condition_dim)
    s2 = 1.0 / jnp.sqrt(hidden_dim)
    w1 = jax.random.uniform(k1, (condition_dim, hidden_dim), jnp.float32, -s1, s1)
    b1 = jax.random.uniform(k2, (1, hidden_dim), jnp.float32, -s1, s1)
    ln_g = jnp.ones((1, hidden_dim), jnp.float32)
    ln_b = jnp.zeros((1, hidden_dim), jnp.float32)
    w2 = jax.random.uniform(k3, (hidden_dim, 2 * feature_dim), jnp.float32, -s2, s2)
    b2 = jax.random.uniform(k4, (1, 2 * feature_dim), jnp.float32, -s2, s2)
    return w1, b1, ln_g, ln_b, w2, b2


def film_reference(x, condition, w1, b1, ln_g, ln_b, w2, b2):
    h = condition @ w1 + b1
    mean = h.mean(-1, keepdims=True)
    var = ((h - mean) ** 2).mean(-1, keepdims=True)
    h = (h - mean) / jnp.sqrt(var + 1e-5) * ln_g + ln_b
    h = jnp.maximum(h, 0.0)
    film = h @ w2 + b2
    F = x.shape[-1]
    gamma, beta = film[:, :F], film[:, F:]
    return (1.0 + gamma) * x + beta


if __name__ == "__main__":
    feature_dim = 32
    condition_dim = 16
    hidden_dim = 32          # default would be condition_dim * 2 = 32
    batch = 512              # -> 2 batch tiles (even grid; both TCs busy on v7x)

    key = jax.random.PRNGKey(0)
    kx, kc, kp = jax.random.split(key, 3)
    x = jax.random.normal(kx, (batch, feature_dim), jnp.float32)
    condition = jax.random.normal(kc, (batch, condition_dim), jnp.float32)
    params = init_params(kp, feature_dim, condition_dim, hidden_dim)

    ref = film_reference(x, condition, *params)

    # f32 MXU path: must match the f32 reference tightly.
    out = film_layer(x, condition, *params, mxu_bf16=False)
    out = jax.block_until_ready(out)
    assert out.shape == (batch, feature_dim)
    assert jnp.allclose(out, ref, atol=1e-4, rtol=1e-4)

    # bf16 HBM-streaming path: loose tolerance (bf16 rounding of x/cond/weights/out).
    out_bf16 = film_layer(x, condition, *params, mxu_bf16=True)
    out_bf16 = jax.block_until_ready(out_bf16)
    diff = float(jnp.max(jnp.abs(out_bf16.astype(jnp.float32) - ref)))
    assert out_bf16.shape == (batch, feature_dim)
    assert jnp.isfinite(diff) and diff < 0.25, diff

    print("KERNEL_OK")
</pallas_src>

<mosaic_0001>
module attributes {stable_mosaic.version = 11 : i64} {
  func.func @film_kernel(%arg0: i32, %arg1: memref<256x128xf32, #tpu.memory_space<vmem>>, %arg2: memref<256x16xf32, #tpu.memory_space<vmem>>, %arg3: memref<16x32xf32, #tpu.memory_space<vmem>>, %arg4: memref<1x32xf32, #tpu.memory_space<vmem>>, %arg5: memref<1x32xf32, #tpu.memory_space<vmem>>, %arg6: memref<1x32xf32, #tpu.memory_space<vmem>>, %arg7: memref<32x256xf32, #tpu.memory_space<vmem>>, %arg8: memref<1x256xf32, #tpu.memory_space<vmem>>, %arg9: memref<256x128xf32, #tpu.memory_space<vmem>>) attributes {dimension_semantics = [#tpu.dimension_semantics<parallel>], iteration_bounds = array<i64: 2>, scalar_prefetch = 0 : i64, scratch_operands = 0 : i64, tpu.core_type = #tpu.core_type<tc>, window_params = [{transform_indices = @transform_0, window_bounds = array<i64: 256, 128>}, {transform_indices = @transform_1, window_bounds = array<i64: 256, 16>}, {pipeline_mode = #tpu.pipeline_mode<synchronous>, transform_indices = @transform_2, window_bounds = array<i64: 16, 32>}, {pipeline_mode = #tpu.pipeline_mode<synchronous>, transform_indices = @transform_3, window_bounds = array<i64: 1, 32>}, {pipeline_mode = #tpu.pipeline_mode<synchronous>, transform_indices = @transform_4, window_bounds = array<i64: 1, 32>}, {pipeline_mode = #tpu.pipeline_mode<synchronous>, transform_indices = @transform_5, window_bounds = array<i64: 1, 32>}, {pipeline_mode = #tpu.pipeline_mode<synchronous>, transform_indices = @transform_6, window_bounds = array<i64: 32, 256>}, {pipeline_mode = #tpu.pipeline_mode<synchronous>, transform_indices = @transform_7, window_bounds = array<i64: 1, 256>}, {transform_indices = @transform_8, window_bounds = array<i64: 256, 128>}]} {
    %c0 = arith.constant 0 : index
    %c0_0 = arith.constant 0 : index
    %0 = vector.load %arg2[%c0, %c0_0] : memref<256x16xf32, #tpu.memory_space<vmem>>, vector<256x16xf32>
    %c0_1 = arith.constant 0 : index
    %c0_2 = arith.constant 0 : index
    %1 = vector.load %arg3[%c0_1, %c0_2] : memref<16x32xf32, #tpu.memory_space<vmem>>, vector<16x32xf32>
    %cst = arith.constant dense<0.000000e+00> : vector<256x32xf32>
    %2 = tpu.matmul %0, %1, %cst {dimension_numbers = #tpu.dot_dimension_numbers<[1], [0], [0], [1], [0, 0, 1, 1], [], []>} : vector<256x16xf32>, vector<16x32xf32>, vector<256x32xf32> -> vector<256x32xf32>
    %c0_3 = arith.constant 0 : index
    %c0_4 = arith.constant 0 : index
    %3 = vector.load %arg4[%c0_3, %c0_4] : memref<1x32xf32, #tpu.memory_space<vmem>>, vector<1x32xf32>
    %4 = vector.broadcast %3 : vector<1x32xf32> to vector<256x32xf32>
    %5 = arith.addf %2, %4 : vector<256x32xf32>
    %cst_5 = arith.constant dense<0.000000e+00> : vector<256xf32>
    %6 = vector.multi_reduction <add>, %5, %cst_5 [1] : vector<256x32xf32> to vector<256xf32>
    %7 = vector.shape_cast %6 : vector<256xf32> to vector<256x1xf32>
    %cst_6 = arith.constant 3.200000e+01 : f32
    %8 = vector.broadcast %cst_6 : f32 to vector<256x1xf32>
    %9 = arith.divf %7, %8 : vector<256x1xf32>
    %10 = vector.broadcast %9 : vector<256x1xf32> to vector<256x32xf32>
    %11 = arith.subf %5, %10 : vector<256x32xf32>
    %12 = arith.mulf %11, %11 : vector<256x32xf32>
    %cst_7 = arith.constant dense<0.000000e+00> : vector<256xf32>
    %13 = vector.multi_reduction <add>, %12, %cst_7 [1] : vector<256x32xf32> to vector<256xf32>
    %14 = vector.shape_cast %13 : vector<256xf32> to vector<256x1xf32>
    %cst_8 = arith.constant 3.200000e+01 : f32
    %15 = vector.broadcast %cst_8 : f32 to vector<256x1xf32>
    %16 = arith.divf %14, %15 : vector<256x1xf32>
    %cst_9 = arith.constant 9.99999974E-6 : f32
    %17 = vector.broadcast %cst_9 : f32 to vector<256x1xf32>
    %18 = arith.addf %16, %17 : vector<256x1xf32>
    %19 = math.rsqrt %18 : vector<256x1xf32>
    %c0_10 = arith.constant 0 : index
    %c0_11 = arith.constant 0 : index
    %20 = vector.load %arg5[%c0_10, %c0_11] : memref<1x32xf32, #tpu.memory_space<vmem>>, vector<1x32xf32>
    %21 = vector.broadcast %19 : vector<256x1xf32> to vector<256x32xf32>
    %22 = vector.broadcast %20 : vector<1x32xf32> to vector<256x32xf32>
    %23 = arith.mulf %21, %22 : vector<256x32xf32>
    %24 = arith.mulf %11, %23 : vector<256x32xf32>
    %c0_12 = arith.constant 0 : index
    %c0_13 = arith.constant 0 : index
    %25 = vector.load %arg6[%c0_12, %c0_13] : memref<1x32xf32, #tpu.memory_space<vmem>>, vector<1x32xf32>
    %26 = vector.broadcast %25 : vector<1x32xf32> to vector<256x32xf32>
    %27 = arith.addf %24, %26 : vector<256x32xf32>
    %cst_14 = arith.constant 0.000000e+00 : f32
    %28 = vector.broadcast %cst_14 : f32 to vector<256x32xf32>
    %29 = arith.maximumf %27, %28 : vector<256x32xf32>
    %c0_15 = arith.constant 0 : index
    %c0_16 = arith.constant 0 : index
    %30 = vector.load %arg7[%c0_15, %c0_16] : memref<32x256xf32, #tpu.memory_space<vmem>>, vector<32x256xf32>
    %cst_17 = arith.constant dense<0.000000e+00> : vector<256x256xf32>
    %31 = tpu.matmul %29, %30, %cst_17 {dimension_numbers = #tpu.dot_dimension_numbers<[1], [0], [0], [1], [0, 0, 1, 1], [], []>} : vector<256x32xf32>, vector<32x256xf32>, vector<256x256xf32> -> vector<256x256xf32>
    %c0_18 = arith.constant 0 : index
    %c0_19 = arith.constant 0 : index
    %32 = vector.load %arg8[%c0_18, %c0_19] : memref<1x256xf32, #tpu.memory_space<vmem>>, vector<1x256xf32>
    %33 = vector.broadcast %32 : vector<1x256xf32> to vector<256x256xf32>
    %34 = arith.addf %31, %33 : vector<256x256xf32>
    %35 = vector.extract_strided_slice %34 {offsets = [0, 0], sizes = [256, 128], strides = [1, 1]} : vector<256x256xf32> to vector<256x128xf32>
    %36 = vector.extract_strided_slice %34 {offsets = [0, 128], sizes = [256, 128], strides = [1, 1]} : vector<256x256xf32> to vector<256x128xf32>
    %c0_20 = arith.constant 0 : index
    %c0_21 = arith.constant 0 : index
    %37 = vector.load %arg1[%c0_20, %c0_21] : memref<256x128xf32, #tpu.memory_space<vmem>>, vector<256x128xf32>
    %38 = arith.mulf %35, %37 : vector<256x128xf32>
    %39 = arith.addf %38, %36 : vector<256x128xf32>
    %40 = arith.addf %37, %39 : vector<256x128xf32>
    %c0_22 = arith.constant 0 : index
    %c0_23 = arith.constant 0 : index
    %41 = vector.load %arg9[%c0_22, %c0_23] : memref<256x128xf32, #tpu.memory_space<vmem>>, vector<256x128xf32>
    tpu.vector_store %arg9[%c0_22, %c0_23], %40 {strides = array<i32>} : memref<256x128xf32, #tpu.memory_space<vmem>>, vector<256x128xf32>,
    return
  }
  func.func @transform_0(%arg0: i32) -> (i32, i32) {
    %c0_i32 = arith.constant 0 : i32
    %c0_i32_0 = arith.constant 0 : i32
    return %arg0, %c0_i32 : i32, i32
  }
  func.func @transform_1(%arg0: i32) -> (i32, i32) {
    %c0_i32 = arith.constant 0 : i32
    %c0_i32_0 = arith.constant 0 : i32
    return %arg0, %c0_i32 : i32, i32
  }
  func.func @transform_2(%arg0: i32) -> (i32, i32) {
    %c0_i32 = arith.constant 0 : i32
    %c0_i32_0 = arith.constant 0 : i32
    %c0_i32_1 = arith.constant 0 : i32
    return %c0_i32, %c0_i32_0 : i32, i32
  }
  func.func @transform_3(%arg0: i32) -> (i32, i32) {
    %c0_i32 = arith.constant 0 : i32
    %c0_i32_0 = arith.constant 0 : i32
    %c0_i32_1 = arith.constant 0 : i32
    return %c0_i32, %c0_i32_0 : i32, i32
  }
  func.func @transform_4(%arg0: i32) -> (i32, i32) {
    %c0_i32 = arith.constant 0 : i32
    %c0_i32_0 = arith.constant 0 : i32
    %c0_i32_1 = arith.constant 0 : i32
    return %c0_i32, %c0_i32_0 : i32, i32
  }
  func.func @transform_5(%arg0: i32) -> (i32, i32) {
    %c0_i32 = arith.constant 0 : i32
    %c0_i32_0 = arith.constant 0 : i32
    %c0_i32_1 = arith.constant 0 : i32
    return %c0_i32, %c0_i32_0 : i32, i32
  }
  func.func @transform_6(%arg0: i32) -> (i32, i32) {
    %c0_i32 = arith.constant 0 : i32
    %c0_i32_0 = arith.constant 0 : i32
    %c0_i32_1 = arith.constant 0 : i32
    return %c0_i32, %c0_i32_0 : i32, i32
  }
  func.func @transform_7(%arg0: i32) -> (i32, i32) {
    %c0_i32 = arith.constant 0 : i32
    %c0_i32_0 = arith.constant 0 : i32
    %c0_i32_1 = arith.constant 0 : i32
    return %c0_i32, %c0_i32_0 : i32, i32
  }
  func.func @transform_8(%arg0: i32) -> (i32, i32) {
    %c0_i32 = arith.constant 0 : i32
    %c0_i32_0 = arith.constant 0 : i32
    return %arg0, %c0_i32 : i32, i32
  }
}

</mosaic_0001>

<llo_original>
// kernel: tpu_custom_call.1
$region0: #{tpu_custom_call.1}
  #allocation0 [shape = 'u32[]', space=smem, size = 0x4, offset = 0x4, fixed_abs, tag = 'smem constant byte address 0x4 - core index']
  #allocation1 [shape = 'u32[72,128]{1,0:T(1,128)}', space=vmem, size = 0x9000, scoped, tag = 'internal scratch']
  %s0 = inlined_call_operand.vmem [shape: f32[512,128], index: 0, kind: input, shape index: {}]
  %s1 = inlined_call_operand.vmem [shape: f32[512,16], index: 1, kind: input, shape index: {}]
  %s2 = inlined_call_operand.hbm [shape: f32[16,32], index: 2, kind: input, shape index: {}]
  %s3 = inlined_call_operand.hbm [shape: f32[1,32], index: 3, kind: input, shape index: {}]
  %s4 = inlined_call_operand.hbm [shape: f32[1,32], index: 4, kind: input, shape index: {}]
  %s5 = inlined_call_operand.hbm [shape: f32[1,32], index: 5, kind: input, shape index: {}]
  %s6 = inlined_call_operand.vmem [shape: f32[32,256], index: 6, kind: input, shape index: {}]
  %s7 = inlined_call_operand.vmem [shape: f32[1,256], index: 7, kind: input, shape index: {}]
  %s8 = inlined_call_operand.hbm [shape: f32[512,128], index: 8, kind: output, shape index: {}]
  %s9 = sld [smem:[#allocation0]]
  $region81: #{tpu_custom_call.1} parent=0
    _
  %s11 = ssub.s32 1, %s9
  %s12 = scalar_select 0, %s11, %s9
  $region1: #{tpu_custom_call.1} parent=0
    #allocation2 [shape = 'u8[8192]{0}', space=vmem, size = 0x2000, scoped, tag = 'input window, operand 2, single buffered']
    #allocation3 [shape = 's32[2]{0}', space=sflag, size = 0x8, scoped, tag = 'scoped memory for tpu_custom_call.1']
    #allocation4 [shape = 's32[2]{0}', space=sflag, size = 0x8, scoped, tag = 'scoped memory for tpu_custom_call.1']
    #allocation5 [shape = 'u8[512]{0}', space=vmem, size = 0x400, scoped, tag = 'input window, operand 3, single buffered']
    #allocation6 [shape = 's32[1]{0}', space=sflag, size = 0x4, scoped, tag = 'scoped memory for tpu_custom_call.1']
    #allocation7 [shape = 'u8[512]{0}', space=vmem, size = 0x400, scoped, tag = 'input window, operand 4, single buffered']
    #allocation8 [shape = 'u8[512]{0}', space=vmem, size = 0x400, scoped, tag = 'input window, operand 5, single buffered']
    #allocation9 [shape = 's32[1]{0}', space=sflag, size = 0x4, scoped, tag = 'scoped memory for tpu_custom_call.1']
    #allocation10 [shape = 'u8[262144]{0}', space=vmem, size = 0x40000, scoped, tag = 'output window, operand 0']
    %13 = vsyncpa [#allocation3], 0
    %14 = vsyncpa [#allocation6], 0
    %15 = vsyncpa [#allocation9], 0
    %16 = vsyncpa [#allocation4], 0
    %s17 = scalar_lea.sflag [#allocation4], 1
    %18 = vsyncpa %s17, 0
    loop: start=0, step=1, limit=4
    $region2: #{tpu_custom_call.1} parent=1 // loop_pre_header
      _
    $region3: #{tpu_custom_call.1} parent=1 // loop_header
      %s20 = sphi 0, %s24
      %p21 = scmp.ge.s32.totalorder %s20, 4
      %s30 = sphi 0, %s32
      %s33 = sphi 0, %s30
      %s34 = sphi 0, %s33
      %s50 = sphi 0, %s34
      %s56 = sphi 0, %s58
      %s59 = sphi 0, %s56
      %s60 = sphi 0, %s59
      %s76 = sphi 0, %s60
      %s80 = sphi 0, %s80
      %s82 = sphi 0, %s80
      %s83 = sphi 0, %s82
      %s97 = sphi 0, %s83
      %s101 = sphi 0, %s101
      %s103 = sphi 0, %s101
      %s104 = sphi 0, %s103
      %s118 = sphi 0, %s104
      %s122 = sphi 0, %s122
      %s124 = sphi 0, %s122
      %s125 = sphi 0, %s124
      %s139 = sphi 0, %s125
      %s143 = sphi 0, %s143
      %s145 = sphi 0, %s143
      %s146 = sphi 0, %s145
      %s160 = sphi 0, %s146
      %s164 = sphi 0, %s164
      %s166 = sphi 0, %s164
      %s167 = sphi 0, %s166
      %s181 = sphi 0, %s167
      %s185 = sphi 0, %s185
      %s187 = sphi 0, %s185
      %s188 = sphi 0, %s187
      %s202 = sphi 0, %s188
      %s208 = sphi 0, %s210
      %s211 = sphi 0, %s208
      %s212 = sphi 0, %s211
      %s228 = sphi 0, %s212
    $region4: #{tpu_custom_call.1} parent=1 // loop_header_branch
      %23 = sbr.rel (%p21) target = $region8
    $region5: #{tpu_custom_call.1} parent=1 // loop_body
      %s25 = ssub.s32 %s20, 1
      %s26 = ssub.s32 %s20, 2
      %s27 = sadd.s32 %s20, 1
      %s28 = ssub.s32 %s20, %s27
      %p29 = scmp.eq.s32.totalorder %s28, 0
      %s31 = sadd.s32 %s30, 1
      %s32 = scalar_select %p29, %s30, %s31
      %p35 = pneg %p29
      %p36 = scmp.eq.s32.totalorder %s20, 1
      %p37 = por %p35, %p36
      %p38 = scmp.ne.s32.totalorder %s30, %s33
      %p39 = scmp.eq.s32.totalorder %s20, 0
      %p40 = por %p38, %p39
      %p41 = scmp.ne.s32.totalorder %s30, %s33
      %p42 = scmp.eq.s32.totalorder %s25, 1
      %p43 = por %p41, %p42
      %p44 = scmp.ne.s32.totalorder %s33, %s34
      %p45 = scmp.eq.s32.totalorder %s25, 0
      %p46 = por %p44, %p45
      %p47 = scmp.ne.s32.totalorder %s33, %s34
      %p48 = scmp.eq.s32.totalorder %s26, 1
      %p49 = por %p47, %p48
      %p51 = scmp.ne.s32.totalorder %s34, %s50
      %p52 = scmp.eq.s32.totalorder %s26, 0
      %p53 = por %p51, %p52
      %s54 = ssub.s32 %s20, %s27
      %p55 = scmp.eq.s32.totalorder %s54, 0
      %s57 = sadd.s32 %s56, 1
      %s58 = scalar_select %p55, %s56, %s57
      %p61 = pneg %p55
      %p62 = scmp.eq.s32.totalorder %s20, 1
      %p63 = por %p61, %p62
      %p64 = scmp.ne.s32.totalorder %s56, %s59
      %p65 = scmp.eq.s32.totalorder %s20, 0
      %p66 = por %p64, %p65
      %p67 = scmp.ne.s32.totalorder %s56, %s59
      %p68 = scmp.eq.s32.totalorder %s25, 1
      %p69 = por %p67, %p68
      %p70 = scmp.ne.s32.totalorder %s59, %s60
      %p71 = scmp.eq.s32.totalorder %s25, 0
      %p72 = por %p70, %p71
      %p73 = scmp.ne.s32.totalorder %s59, %s60
      %p74 = scmp.eq.s32.totalorder %s26, 1
      %p75 = por %p73, %p74
      %p77 = scmp.ne.s32.totalorder %s60, %s76
      %p78 = scmp.eq.s32.totalorder %s26, 0
      %p79 = por %p77, %p78
      %s81 = sadd.s32 %s80, 1
      %p84 = scmp.eq.s32.totalorder %s20, 1
      %p85 = scmp.ne.s32.totalorder %s80, %s82
      %p86 = scmp.eq.s32.totalorder %s20, 0
      %p87 = por %p85, %p86
      %p88 = scmp.ne.s32.totalorder %s80, %s82
      %p89 = scmp.eq.s32.totalorder %s25, 1
      %p90 = por %p88, %p89
      %p91 = scmp.ne.s32.totalorder %s82, %s83
      %p92 = scmp.eq.s32.totalorder %s25, 0
      %p93 = por %p91, %p92
      %p94 = scmp.ne.s32.totalorder %s82, %s83
      %p95 = scmp.eq.s32.totalorder %s26, 1
      %p96 = por %p94, %p95
      %p98 = scmp.ne.s32.totalorder %s83, %s97
      %p99 = scmp.eq.s32.totalorder %s26, 0
      %p100 = por %p98, %p99
      %s102 = sadd.s32 %s101, 1
      %p105 = scmp.eq.s32.totalorder %s20, 1
      %p106 = scmp.ne.s32.totalorder %s101, %s103
      %p107 = scmp.eq.s32.totalorder %s20, 0
      %p108 = por %p106, %p107
      %p109 = scmp.ne.s32.totalorder %s101, %s103
      %p110 = scmp.eq.s32.totalorder %s25, 1
      %p111 = por %p109, %p110
      %p112 = scmp.ne.s32.totalorder %s103, %s104
      %p113 = scmp.eq.s32.totalorder %s25, 0
      %p114 = por %p112, %p113
      %p115 = scmp.ne.s32.totalorder %s103, %s104
      %p116 = scmp.eq.s32.totalorder %s26, 1
      %p117 = por %p115, %p116
      %p119 = scmp.ne.s32.totalorder %s104, %s118
      %p120 = scmp.eq.s32.totalorder %s26, 0
      %p121 = por %p119, %p120
      %s123 = sadd.s32 %s122, 1
      %p126 = scmp.eq.s32.totalorder %s20, 1
      %p127 = scmp.ne.s32.totalorder %s122, %s124
      %p128 = scmp.eq.s32.totalorder %s20, 0
      %p129 = por %p127, %p128
      %p130 = scmp.ne.s32.totalorder %s122, %s124
      %p131 = scmp.eq.s32.totalorder %s25, 1
      %p132 = por %p130, %p131
      %p133 = scmp.ne.s32.totalorder %s124, %s125
      %p134 = scmp.eq.s32.totalorder %s25, 0
      %p135 = por %p133, %p134
      %p136 = scmp.ne.s32.totalorder %s124, %s125
      %p137 = scmp.eq.s32.totalorder %s26, 1
      %p138 = por %p136, %p137
      %p140 = scmp.ne.s32.totalorder %s125, %s139
      %p141 = scmp.eq.s32.totalorder %s26, 0
      %p142 = por %p140, %p141
      %s144 = sadd.s32 %s143, 1
      %p147 = scmp.eq.s32.totalorder %s20, 1
      %p148 = scmp.ne.s32.totalorder %s143, %s145
      %p149 = scmp.eq.s32.totalorder %s20, 0
      %p150 = por %p148, %p149
      %p151 = scmp.ne.s32.totalorder %s143, %s145
      %p152 = scmp.eq.s32.totalorder %s25, 1
      %p153 = por %p151, %p152
      %p154 = scmp.ne.s32.totalorder %s145, %s146
      %p155 = scmp.eq.s32.totalorder %s25, 0
      %p156 = por %p154, %p155
      %p157 = scmp.ne.s32.totalorder %s145, %s146
      %p158 = scmp.eq.s32.totalorder %s26, 1
      %p159 = por %p157, %p158
      %p161 = scmp.ne.s32.totalorder %s146, %s160
      %p162 = scmp.eq.s32.totalorder %s26, 0
      %p163 = por %p161, %p162
      %s165 = sadd.s32 %s164, 1
      %p168 = scmp.eq.s32.totalorder %s20, 1
      %p169 = scmp.ne.s32.totalorder %s164, %s166
      %p170 = scmp.eq.s32.totalorder %s20, 0
      %p171 = por %p169, %p170
      %p172 = scmp.ne.s32.totalorder %s164, %s166
      %p173 = scmp.eq.s32.totalorder %s25, 1
      %p174 = por %p172, %p173
      %p175 = scmp.ne.s32.totalorder %s166, %s167
      %p176 = scmp.eq.s32.totalorder %s25, 0
      %p177 = por %p175, %p176
      %p178 = scmp.ne.s32.totalorder %s166, %s167
      %p179 = scmp.eq.s32.totalorder %s26, 1
      %p180 = por %p178, %p179
      %p182 = scmp.ne.s32.totalorder %s167, %s181
      %p183 = scmp.eq.s32.totalorder %s26, 0
      %p184 = por %p182, %p183
      %s186 = sadd.s32 %s185, 1
      %p189 = scmp.eq.s32.totalorder %s20, 1
      %p190 = scmp.ne.s32.totalorder %s185, %s187
      %p191 = scmp.eq.s32.totalorder %s20, 0
      %p192 = por %p190, %p191
      %p193 = scmp.ne.s32.totalorder %s185, %s187
      %p194 = scmp.eq.s32.totalorder %s25, 1
      %p195 = por %p193, %p194
      %p196 = scmp.ne.s32.totalorder %s187, %s188
      %p197 = scmp.eq.s32.totalorder %s25, 0
      %p198 = por %p196, %p197
      %p199 = scmp.ne.s32.totalorder %s187, %s188
      %p200 = scmp.eq.s32.totalorder %s26, 1
      %p201 = por %p199, %p200
      %p203 = scmp.ne.s32.totalorder %s188, %s202
      %p204 = scmp.eq.s32.totalorder %s26, 0
      %p205 = por %p203, %p204
      %s206 = ssub.s32 %s20, %s27
      %p207 = scmp.eq.s32.totalorder %s206, 0
      %s209 = sadd.s32 %s208, 1
      %s210 = scalar_select %p207, %s208, %s209
      %p213 = pneg %p207
      %p214 = scmp.eq.s32.totalorder %s20, 1
      %p215 = por %p213, %p214
      %p216 = scmp.ne.s32.totalorder %s208, %s211
      %p217 = scmp.eq.s32.totalorder %s20, 0
      %p218 = por %p216, %p217
      %p219 = scmp.ne.s32.totalorder %s208, %s211
      %p220 = scmp.eq.s32.totalorder %s25, 1
      %p221 = por %p219, %p220
      %p222 = scmp.ne.s32.totalorder %s211, %s212
      %p223 = scmp.eq.s32.totalorder %s25, 0
      %p224 = por %p222, %p223
      %p225 = scmp.ne.s32.totalorder %s211, %s212
      %p226 = scmp.eq.s32.totalorder %s26, 1
      %p227 = por %p225, %p226
      %p229 = scmp.ne.s32.totalorder %s212, %s228
      %p230 = scmp.eq.s32.totalorder %s26, 0
      %p231 = por %p229, %p230
      %p232 = scmp.le.s32.totalorder 1, %s20
      %p233 = scmp.lt.s32.totalorder %s20, 3
      %p234 = pnand %p232, %p233
      %p235 = pneg %p234
      // Predicated region
      $region9: #{tpu_custom_call.1} parent=5 // pred_check
        _
      $region10: #{tpu_custom_call.1} parent=5 // pred_check_branch
        %237 = sbr.rel (%p234) target = $region12
      $region11: #{tpu_custom_call.1} parent=5 // pred_region
        %s238 = ssub.s32 %s20, 1
        // Predicated region
        $region13: #{tpu_custom_call.1} parent=11 // pred_check
          %p239 = pneg %p93
        $region14: #{tpu_custom_call.1} parent=11 // pred_check_branch
          %241 = sbr.rel (%p239) target = $region16
        $region15: #{tpu_custom_call.1} parent=11 // pred_region
          %243 = vsyncadd [#allocation3], 0
          %s244 = sshll.u32 %s2, 4
          %s245 = int_to_ptr.hbm [resolvable:$true] %s244
          %s246 = sshll.u32 [#allocation2], 4
          %s247 = int_to_ptr.vmem [resolvable:$true] %s246
          %252 = dma.hbm_to_vmem [thread:$0]  %s245, 256, %s247, [#allocation3], 128, 128, 8
        $region16: #{tpu_custom_call.1} parent=11 // pred_fallthru
          _
        // Predicated region
        $region17: #{tpu_custom_call.1} parent=11 // pred_check
          %p253 = pneg %p114
        $region18: #{tpu_custom_call.1} parent=11 // pred_check_branch
          %255 = sbr.rel (%p253) target = $region20
        $region19: #{tpu_custom_call.1} parent=11 // pred_region
          %257 = vsyncadd [#allocation6], 0
          %s259 = sshll.u32 %s3, 4
          %s260 = int_to_ptr.hbm [resolvable:$true] %s259
          %s261 = sshll.u32 [#allocation5], 4
          %s262 = int_to_ptr.vmem [resolvable:$true] %s261
          %264 = dma.hbm_to_vmem [thread:$0]  %s260, 16, %s262, [#allocation6]
        $region20: #{tpu_custom_call.1} parent=11 // pred_fallthru
          _
        // Predicated region
        $region21: #{tpu_custom_call.1} parent=11 // pred_check
          %p265 = pneg %p135
        $region22: #{tpu_custom_call.1} parent=11 // pred_check_branch
          %267 = sbr.rel (%p265) target = $region24
        $region23: #{tpu_custom_call.1} parent=11 // pred_region
          %269 = vsyncadd [#allocation6], 0
          %s271 = sshll.u32 %s4, 4
          %s272 = int_to_ptr.hbm [resolvable:$true] %s271
          %s273 = sshll.u32 [#allocation7], 4
          %s274 = int_to_ptr.vmem [resolvable:$true] %s273
          %276 = dma.hbm_to_vmem [thread:$0]  %s272, 16, %s274, [#allocation6]
        $region24: #{tpu_custom_call.1} parent=11 // pred_fallthru
          _
        // Predicated region
        $region25: #{tpu_custom_call.1} parent=11 // pred_check
          %p277 = pneg %p156
        $region26: #{tpu_custom_call.1} parent=11 // pred_check_branch
          %279 = sbr.rel (%p277) target = $region28
        $region27: #{tpu_custom_call.1} parent=11 // pred_region
          %281 = vsyncadd [#allocation9], 0
          %s283 = sshll.u32 %s5, 4
          %s284 = int_to_ptr.hbm [resolvable:$true] %s283
          %s285 = sshll.u32 [#allocation8], 4
          %s286 = int_to_ptr.vmem [resolvable:$true] %s285
          %288 = dma.hbm_to_vmem [thread:$0]  %s284, 16, %s286, [#allocation9]
        $region28: #{tpu_custom_call.1} parent=11 // pred_fallthru
          _
        // Predicated region
        $region29: #{tpu_custom_call.1} parent=11 // pred_check
          %p289 = pneg %p177
        $region30: #{tpu_custom_call.1} parent=11 // pred_check_branch
          %291 = sbr.rel (%p289) target = $region32
        $region31: #{tpu_custom_call.1} parent=11 // pred_region
          _
        $region32: #{tpu_custom_call.1} parent=11 // pred_fallthru
          _
        // Predicated region
        $region33: #{tpu_custom_call.1} parent=11 // pred_check
          %p292 = pneg %p198
        $region34: #{tpu_custom_call.1} parent=11 // pred_check_branch
          %294 = sbr.rel (%p292) target = $region36
        $region35: #{tpu_custom_call.1} parent=11 // pred_region
          _
        $region36: #{tpu_custom_call.1} parent=11 // pred_fallthru
          _
      $region12: #{tpu_custom_call.1} parent=5 // pred_fallthru
        _
      %p295 = scmp.lt.s32.totalorder %s20, 2
      // Predicated region
      $region37: #{tpu_custom_call.1} parent=5 // pred_check
        %p296 = pneg %p295
      $region38: #{tpu_custom_call.1} parent=5 // pred_check_branch
        %298 = sbr.rel (%p296) target = $region40
      $region39: #{tpu_custom_call.1} parent=5 // pred_region
        // Predicated region
        $region41: #{tpu_custom_call.1} parent=39 // pred_check
          %p299 = pneg %p40
        $region42: #{tpu_custom_call.1} parent=39 // pred_check_branch
          %301 = sbr.rel (%p299) target = $region44
        $region43: #{tpu_custom_call.1} parent=39 // pred_region
          %s302 = smul.u32 32, %s20
          %p303 = scmp.lt.s32.totalorder %s302, 63
          %s304 = scalar_select %p303, %s302, 63
          %s305 = smul.addr %s304, 8
          %s306 = scalar_lea.vmem %s0, %s305
          %s307 = smul.u32 32, %s20
        $region44: #{tpu_custom_call.1} parent=39 // pred_fallthru
          _
        // Predicated region
        $region45: #{tpu_custom_call.1} parent=39 // pred_check
          %p308 = pneg %p66
        $region46: #{tpu_custom_call.1} parent=39 // pred_check_branch
          %310 = sbr.rel (%p308) target = $region48
        $region47: #{tpu_custom_call.1} parent=39 // pred_region
          %s311 = smul.u32 32, %s20
          %p312 = scmp.lt.s32.totalorder %s311, 63
          %s313 = scalar_select %p312, %s311, 63
          %s314 = smul.addr %s313, 8
          %s315 = scalar_lea.vmem %s1, %s314
          %s316 = smul.u32 32, %s20
        $region48: #{tpu_custom_call.1} parent=39 // pred_fallthru
          _
      $region40: #{tpu_custom_call.1} parent=5 // pred_fallthru
        _
      %p317 = scmp.le.s32.totalorder 1, %s20
      %p318 = scmp.lt.s32.totalorder %s20, 3
      %p319 = pnand %p317, %p318
      %p320 = pneg %p319
      // Predicated region
      $region49: #{tpu_custom_call.1} parent=5 // pred_check
        _
      $region50: #{tpu_custom_call.1} parent=5 // pred_check_branch
        %322 = sbr.rel (%p319) target = $region52
      $region51: #{tpu_custom_call.1} parent=5 // pred_region
        %s323 = ssub.s32 %s20, 1
        // Predicated region
        $region53: #{tpu_custom_call.1} parent=51 // pred_check
          %p324 = pneg %p93
        $region54: #{tpu_custom_call.1} parent=51 // pred_check_branch
          %326 = sbr.rel (%p324) target = $region56
        $region55: #{tpu_custom_call.1} parent=51 // pred_region
          %328 = dma.done [#allocation3], 256
        $region56: #{tpu_custom_call.1} parent=51 // pred_fallthru
          _
        // Predicated region
        $region57: #{tpu_custom_call.1} parent=51 // pred_check
          %p329 = pneg %p114
        $region58: #{tpu_custom_call.1} parent=51 // pred_check_branch
          %331 = sbr.rel (%p329) target = $region60
        $region59: #{tpu_custom_call.1} parent=51 // pred_region
          %333 = dma.done [#allocation6], 16
        $region60: #{tpu_custom_call.1} parent=51 // pred_fallthru
          _
        // Predicated region
        $region61: #{tpu_custom_call.1} parent=51 // pred_check
          %p334 = pneg %p135
        $region62: #{tpu_custom_call.1} parent=51 // pred_check_branch
          %336 = sbr.rel (%p334) target = $region64
        $region63: #{tpu_custom_call.1} parent=51 // pred_region
          %338 = dma.done [#allocation6], 16
        $region64: #{tpu_custom_call.1} parent=51 // pred_fallthru
          _
        // Predicated region
        $region65: #{tpu_custom_call.1} parent=51 // pred_check
          %p339 = pneg %p156
        $region66: #{tpu_custom_call.1} parent=51 // pred_check_branch
          %341 = sbr.rel (%p339) target = $region68
        $region67: #{tpu_custom_call.1} parent=51 // pred_region
          %343 = dma.done [#allocation9], 16
        $region68: #{tpu_custom_call.1} parent=51 // pred_fallthru
          _
        %s344 = smul.u32 32, %s25
        %p345 = scmp.lt.s32.totalorder %s344, 63
        %s346 = scalar_select %p345, %s344, 63
        %s347 = smul.addr %s346, 8
        %s348 = scalar_lea.vmem %s0, %s347
        %p349 = pneg %p46
        %p350 = pneg %p43
        %s351 = smul.u32 32, %s25
        %p352 = scmp.lt.s32.totalorder %s351, 63
        %s353 = scalar_select %p352, %s351, 63
        %s354 = smul.addr %s353, 8
        %s355 = scalar_lea.vmem %s1, %s354
        %p356 = pneg %p72
        %p357 = pneg %p69
        %p358 = pneg %p93
        %p359 = pneg %p90
        %p360 = pneg %p114
        %p361 = pneg %p111
        %p362 = pneg %p135
        %p363 = pneg %p132
        %p364 = pneg %p156
        %p365 = pneg %p153
        %p366 = pneg %p177
        %p367 = pneg %p174
        %p368 = pneg %p198
        %p369 = pneg %p195
        %p370 = pneg %p224
        %p371 = pneg %p221
        %s372 = sand.u32 %s211, 1
        %s373 = scalar_lea.sflag [#allocation4], %s372
        %s374 = sand.u32 %s211, 1
        %s375 = smul.addr %s374, 256
        %s376 = scalar_lea.vmem [#allocation10], %s375
        %s377 = smul.u32 32, %s25
        %p378 = scmp.lt.s32.totalorder %s377, 63
        %s379 = scalar_select %p378, %s377, 63
        %s380 = smul.addr %s379, 8
        %s381 = scalar_lea.vmem %s0, %s380
        %s382 = smul.u32 32, %s25
        %s383 = smul.u32 32, %s25
        %p384 = scmp.lt.s32.totalorder %s383, 63
        %s385 = scalar_select %p384, %s383, 63
        %s386 = smul.addr %s385, 8
        %s387 = scalar_lea.vmem %s1, %s386
        %s388 = smul.u32 32, %s25
        %s389 = smul.u32 32, %s25
        %v390 = vld [vmem:[%s387] sm:$0xff]
        %v391 = vld [vmem:[%s387 + $0x8] sm:$0xff]
        %v392 = vld [vmem:[%s387 + $0x10] sm:$0xff]
        %v393 = vld [vmem:[%s387 + $0x18] sm:$0xff]
        %v394 = vld [vmem:[%s387 + $0x20] sm:$0xff]
        %v395 = vld [vmem:[%s387 + $0x28] sm:$0xff]
        %v396 = vld [vmem:[%s387 + $0x30] sm:$0xff]
        %v397 = vld [vmem:[%s387 + $0x38] sm:$0xff]
        %v398 = vld [vmem:[%s387 + $0x40] sm:$0xff]
        %v399 = vld [vmem:[%s387 + $0x48] sm:$0xff]
        %v400 = vld [vmem:[%s387 + $0x50] sm:$0xff]
        %v401 = vld [vmem:[%s387 + $0x58] sm:$0xff]
        %v402 = vld [vmem:[%s387 + $0x60] sm:$0xff]
        %v403 = vld [vmem:[%s387 + $0x68] sm:$0xff]
        %v404 = vld [vmem:[%s387 + $0x70] sm:$0xff]
        %v405 = vld [vmem:[%s387 + $0x78] sm:$0xff]
        %v406 = vld [vmem:[%s387 + $0x80] sm:$0xff]
        %v407 = vld [vmem:[%s387 + $0x88] sm:$0xff]
        %v408 = vld [vmem:[%s387 + $0x90] sm:$0xff]
        %v409 = vld [vmem:[%s387 + $0x98] sm:$0xff]
        %v410 = vld [vmem:[%s387 + $0xa0] sm:$0xff]
        %v411 = vld [vmem:[%s387 + $0xa8] sm:$0xff]
        %v412 = vld [vmem:[%s387 + $0xb0] sm:$0xff]
        %v413 = vld [vmem:[%s387 + $0xb8] sm:$0xff]
        %v414 = vld [vmem:[%s387 + $0xc0] sm:$0xff]
        %v415 = vld [vmem:[%s387 + $0xc8] sm:$0xff]
        %v416 = vld [vmem:[%s387 + $0xd0] sm:$0xff]
        %v417 = vld [vmem:[%s387 + $0xd8] sm:$0xff]
        %v418 = vld [vmem:[%s387 + $0xe0] sm:$0xff]
        %v419 = vld [vmem:[%s387 + $0xe8] sm:$0xff]
        %v420 = vld [vmem:[%s387 + $0xf0] sm:$0xff]
        %v421 = vld [vmem:[%s387 + $0xf8] sm:$0xff]
        %v422 = vld [vmem:[#allocation2] sm:$0xff]
        %v423 = vld [vmem:[#allocation2 + $0x8] sm:$0xff]
        %v424 = vld [vmem:[#allocation5] sm:$0x1]
        %v426 = vperm.slane %v424, 0
        %vm428 = vcmask 130048
        %v430 = vsel %vm428, %v390, 0
        %v433 = vsel %vm428, %v391, 0
        %v436 = vsel %vm428, %v392, 0
        %v439 = vsel %vm428, %v393, 0
        %v442 = vsel %vm428, %v394, 0
        %v445 = vsel %vm428, %v395, 0
        %v448 = vsel %vm428, %v396, 0
        %v451 = vsel %vm428, %v397, 0
        %v454 = vsel %vm428, %v398, 0
        %v457 = vsel %vm428, %v399, 0
        %v460 = vsel %vm428, %v400, 0
        %v463 = vsel %vm428, %v401, 0
        %v466 = vsel %vm428, %v402, 0
        %v469 = vsel %vm428, %v403, 0
        %v472 = vsel %vm428, %v404, 0
        %v475 = vsel %vm428, %v405, 0
        %v478 = vsel %vm428, %v406, 0
        %v481 = vsel %vm428, %v407, 0
        %v484 = vsel %vm428, %v408, 0
        %v487 = vsel %vm428, %v409, 0
        %v490 = vsel %vm428, %v410, 0
        %v493 = vsel %vm428, %v411, 0
        %v496 = vsel %vm428, %v412, 0
        %v499 = vsel %vm428, %v413, 0
        %v502 = vsel %vm428, %v414, 0
        %v505 = vsel %vm428, %v415, 0
        %v508 = vsel %vm428, %v416, 0
        %v511 = vsel %vm428, %v417, 0
        %v514 = vsel %vm428, %v418, 0
        %v517 = vsel %vm428, %v419, 0
        %v520 = vsel %vm428, %v420, 0
        %v523 = vsel %vm428, %v421, 0
        %525 = vmatpush.msra.mxu0 0.0
        %526 = vmatpush.msra.mxu0 0.0
        %527 = vmatpush.msra.mxu0 0.0
        %528 = vmatpush.msra.mxu0 0.0
        %529 = vmatpush.msra.mxu0 0.0
        %530 = vmatpush.msra.mxu0 0.0
        %531 = vmatpush.msra.mxu0 0.0
        %532 = vmatpush.msra.mxu0 0.0
        %533 = vmatpush.msra.mxu0 0.0
        %534 = vmatpush.msra.mxu0 0.0
        %535 = vmatpush.msra.mxu0 0.0
        %536 = vmatpush.msra.mxu0 0.0
        %537 = vmatpush.msra.mxu0 0.0
        %538 = vmatpush.msra.mxu0 0.0
        %539 = vmatpush.msra.mxu0 %v423
        %540 = vmatpush.msra.mxu0 %v422
        %541 = vmatmul.f32.gmra.mxu0 %v430
        %v542 = vpop.f32.mrf.mxu0
        %v543 = vadd.f32 %v426, %v542
        %544 = vmatmul.f32.gmra.mxu0 %v433
        %v545 = vpop.f32.mrf.mxu0
        %v546 = vadd.f32 %v426, %v545
        %547 = vmatmul.f32.gmra.mxu0 %v436
        %v548 = vpop.f32.mrf.mxu0
        %v549 = vadd.f32 %v426, %v548
        %550 = vmatmul.f32.gmra.mxu0 %v439
        %v551 = vpop.f32.mrf.mxu0
        %v552 = vadd.f32 %v426, %v551
        %553 = vmatmul.f32.gmra.mxu0 %v442
        %v554 = vpop.f32.mrf.mxu0
        %v555 = vadd.f32 %v426, %v554
        %556 = vmatmul.f32.gmra.mxu0 %v445
        %v557 = vpop.f32.mrf.mxu0
        %v558 = vadd.f32 %v426, %v557
        %559 = vmatmul.f32.gmra.mxu0 %v448
        %v560 = vpop.f32.mrf.mxu0
        %v561 = vadd.f32 %v426, %v560
        %562 = vmatmul.f32.gmra.mxu0 %v451
        %v563 = vpop.f32.mrf.mxu0
        %v564 = vadd.f32 %v426, %v563
        %565 = vmatmul.f32.gmra.mxu0 %v454
        %v566 = vpop.f32.mrf.mxu0
        %v567 = vadd.f32 %v426, %v566
        %568 = vmatmul.f32.gmra.mxu0 %v457
        %v569 = vpop.f32.mrf.mxu0
        %v570 = vadd.f32 %v426, %v569
        %571 = vmatmul.f32.gmra.mxu0 %v460
        %v572 = vpop.f32.mrf.mxu0
        %v573 = vadd.f32 %v426, %v572
        %574 = vmatmul.f32.gmra.mxu0 %v463
        %v575 = vpop.f32.mrf.mxu0
        %v576 = vadd.f32 %v426, %v575
        %577 = vmatmul.f32.gmra.mxu0 %v466
        %v578 = vpop.f32.mrf.mxu0
        %v579 = vadd.f32 %v426, %v578
        %580 = vmatmul.f32.gmra.mxu0 %v469
        %v581 = vpop.f32.mrf.mxu0
        %v582 = vadd.f32 %v426, %v581
        %583 = vmatmul.f32.gmra.mxu0 %v472
        %v584 = vpop.f32.mrf.mxu0
        %v585 = vadd.f32 %v426, %v584
        %586 = vmatmul.f32.gmra.mxu0 %v475
        %v587 = vpop.f32.mrf.mxu0
        %v588 = vadd.f32 %v426, %v587
        %589 = vmatmul.f32.gmra.mxu0 %v478
        %v590 = vpop.f32.mrf.mxu0
        %v591 = vadd.f32 %v426, %v590
        %592 = vmatmul.f32.gmra.mxu0 %v481
        %v593 = vpop.f32.mrf.mxu0
        %v594 = vadd.f32 %v426, %v593
        %595 = vmatmul.f32.gmra.mxu0 %v484
        %v596 = vpop.f32.mrf.mxu0
        %v597 = vadd.f32 %v426, %v596
        %598 = vmatmul.f32.gmra.mxu0 %v487
        %v599 = vpop.f32.mrf.mxu0
        %v600 = vadd.f32 %v426, %v599
        %601 = vmatmul.f32.gmra.mxu0 %v490
        %v602 = vpop.f32.mrf.mxu0
        %v603 = vadd.f32 %v426, %v602
        %604 = vmatmul.f32.gmra.mxu0 %v493
        %v605 = vpop.f32.mrf.mxu0
        %v606 = vadd.f32 %v426, %v605
        %607 = vmatmul.f32.gmra.mxu0 %v496
        %v608 = vpop.f32.mrf.mxu0
        %v609 = vadd.f32 %v426, %v608
        %610 = vmatmul.f32.gmra.mxu0 %v499
        %v611 = vpop.f32.mrf.mxu0
        %v612 = vadd.f32 %v426, %v611
        %613 = vmatmul.f32.gmra.mxu0 %v502
        %v614 = vpop.f32.mrf.mxu0
        %v615 = vadd.f32 %v426, %v614
        %616 = vmatmul.f32.gmra.mxu0 %v505
        %v617 = vpop.f32.mrf.mxu0
        %v618 = vadd.f32 %v426, %v617
        %619 = vmatmul.f32.gmra.mxu0 %v508
        %v620 = vpop.f32.mrf.mxu0
        %v621 = vadd.f32 %v426, %v620
        %622 = vmatmul.f32.gmra.mxu0 %v511
        %v623 = vpop.f32.mrf.mxu0
        %v624 = vadd.f32 %v426, %v623
        %625 = vmatmul.f32.gmra.mxu0 %v514
        %v626 = vpop.f32.mrf.mxu0
        %v627 = vadd.f32 %v426, %v626
        %628 = vmatmul.f32.gmra.mxu0 %v517
        %v629 = vpop.f32.mrf.mxu0
        %v630 = vadd.f32 %v426, %v629
        %631 = vmatmul.f32.gmra.mxu0 %v520
        %v632 = vpop.f32.mrf.mxu0
        %v633 = vadd.f32 %v426, %v632
        %634 = vmatmul.f32.gmra.mxu0 %v523
        %v635 = vpop.f32.mrf.mxu0
        %v636 = vadd.f32 %v426, %v635
        %637 = vdwg.mxu0
        %vm638 = vcmask 261120
        %v639 = vsel %vm638, %v543, 0.0
        %640 = vadd.xlane.f32.xlu0 %v639
        %v641 = vpop.xlane.xlu0 %640
        %v642 = vsel %vm638, %v546, 0.0
        %643 = vadd.xlane.f32.xlu0 %v642
        %v644 = vpop.xlane.xlu0 %643
        %v645 = vsel %vm638, %v549, 0.0
        %646 = vadd.xlane.f32.xlu0 %v645
        %v647 = vpop.xlane.xlu0 %646
        %v648 = vsel %vm638, %v552, 0.0
        %649 = vadd.xlane.f32.xlu0 %v648
        %v650 = vpop.xlane.xlu0 %649
        %v651 = vsel %vm638, %v555, 0.0
        %652 = vadd.xlane.f32.xlu0 %v651
        %v653 = vpop.xlane.xlu0 %652
        %v654 = vsel %vm638, %v558, 0.0
        %655 = vadd.xlane.f32.xlu0 %v654
        %v656 = vpop.xlane.xlu0 %655
        %v657 = vsel %vm638, %v561, 0.0
        %658 = vadd.xlane.f32.xlu0 %v657
        %v659 = vpop.xlane.xlu0 %658
        %v660 = vsel %vm638, %v564, 0.0
        %661 = vadd.xlane.f32.xlu0 %v660
        %v662 = vpop.xlane.xlu0 %661
        %v663 = vsel %vm638, %v567, 0.0
        %664 = vadd.xlane.f32.xlu0 %v663
        %v665 = vpop.xlane.xlu0 %664
        %v666 = vsel %vm638, %v570, 0.0
        %667 = vadd.xlane.f32.xlu0 %v666
        %v668 = vpop.xlane.xlu0 %667
        %v669 = vsel %vm638, %v573, 0.0
        %670 = vadd.xlane.f32.xlu0 %v669
        %v671 = vpop.xlane.xlu0 %670
        %v672 = vsel %vm638, %v576, 0.0
        %673 = vadd.xlane.f32.xlu0 %v672
        %v674 = vpop.xlane.xlu0 %673
        %v675 = vsel %vm638, %v579, 0.0
        %676 = vadd.xlane.f32.xlu0 %v675
        %v677 = vpop.xlane.xlu0 %676
        %v678 = vsel %vm638, %v582, 0.0
        %679 = vadd.xlane.f32.xlu0 %v678
        %v680 = vpop.xlane.xlu0 %679
        %v681 = vsel %vm638, %v585, 0.0
        %682 = vadd.xlane.f32.xlu0 %v681
        %v683 = vpop.xlane.xlu0 %682
        %v684 = vsel %vm638, %v588, 0.0
        %685 = vadd.xlane.f32.xlu0 %v684
        %v686 = vpop.xlane.xlu0 %685
        %v687 = vsel %vm638, %v591, 0.0
        %688 = vadd.xlane.f32.xlu0 %v687
        %v689 = vpop.xlane.xlu0 %688
        %v690 = vsel %vm638, %v594, 0.0
        %691 = vadd.xlane.f32.xlu0 %v690
        %v692 = vpop.xlane.xlu0 %691
        %v693 = vsel %vm638, %v597, 0.0
        %694 = vadd.xlane.f32.xlu0 %v693
        %v695 = vpop.xlane.xlu0 %694
        %v696 = vsel %vm638, %v600, 0.0
        %697 = vadd.xlane.f32.xlu0 %v696
        %v698 = vpop.xlane.xlu0 %697
        %v699 = vsel %vm638, %v603, 0.0
        %700 = vadd.xlane.f32.xlu0 %v699
        %v701 = vpop.xlane.xlu0 %700
        %v702 = vsel %vm638, %v606, 0.0
        %703 = vadd.xlane.f32.xlu0 %v702
        %v704 = vpop.xlane.xlu0 %703
        %v705 = vsel %vm638, %v609, 0.0
        %706 = vadd.xlane.f32.xlu0 %v705
        %v707 = vpop.xlane.xlu0 %706
        %v708 = vsel %vm638, %v612, 0.0
        %709 = vadd.xlane.f32.xlu0 %v708
        %v710 = vpop.xlane.xlu0 %709
        %v711 = vsel %vm638, %v615, 0.0
        %712 = vadd.xlane.f32.xlu0 %v711
        %v713 = vpop.xlane.xlu0 %712
        %v714 = vsel %vm638, %v618, 0.0
        %715 = vadd.xlane.f32.xlu0 %v714
        %v716 = vpop.xlane.xlu0 %715
        %v717 = vsel %vm638, %v621, 0.0
        %718 = vadd.xlane.f32.xlu0 %v717
        %v719 = vpop.xlane.xlu0 %718
        %v720 = vsel %vm638, %v624, 0.0
        %721 = vadd.xlane.f32.xlu0 %v720
        %v722 = vpop.xlane.xlu0 %721
        %v723 = vsel %vm638, %v627, 0.0
        %724 = vadd.xlane.f32.xlu0 %v723
        %v725 = vpop.xlane.xlu0 %724
        %v726 = vsel %vm638, %v630, 0.0
        %727 = vadd.xlane.f32.xlu0 %v726
        %v728 = vpop.xlane.xlu0 %727
        %v729 = vsel %vm638, %v633, 0.0
        %730 = vadd.xlane.f32.xlu0 %v729
        %v731 = vpop.xlane.xlu0 %730
        %v732 = vsel %vm638, %v636, 0.0
        %733 = vadd.xlane.f32.xlu0 %v732
        %v734 = vpop.xlane.xlu0 %733
        %v735 = vrcp.pop 32.0
        %v736 = vmul.f32 32.0, %v735
        %v737 = vsub.f32 1.0, %v736
        %v738 = vmul.f32 %v735, %v737
        %v739 = vadd.f32 %v735, %v738
        %vm740 = vweird.f32 %v735
        %v741 = vsel %vm740, %v735, %v739
        %v742 = vmul.f32 %v641, %v741
        %v743 = vmul.f32 %v644, %v741
        %v744 = vmul.f32 %v647, %v741
        %v745 = vmul.f32 %v650, %v741
        %v746 = vmul.f32 %v653, %v741
        %v747 = vmul.f32 %v656, %v741
        %v748 = vmul.f32 %v659, %v741
        %v749 = vmul.f32 %v662, %v741
        %v750 = vmul.f32 %v665, %v741
        %v751 = vmul.f32 %v668, %v741
        %v752 = vmul.f32 %v671, %v741
        %v753 = vmul.f32 %v674, %v741
        %v754 = vmul.f32 %v677, %v741
        %v755 = vmul.f32 %v680, %v741
        %v756 = vmul.f32 %v683, %v741
        %v757 = vmul.f32 %v686, %v741
        %v758 = vmul.f32 %v689, %v741
        %v759 = vmul.f32 %v692, %v741
        %v760 = vmul.f32 %v695, %v741
        %v761 = vmul.f32 %v698, %v741
        %v762 = vmul.f32 %v701, %v741
        %v763 = vmul.f32 %v704, %v741
        %v764 = vmul.f32 %v707, %v741
        %v765 = vmul.f32 %v710, %v741
        %v766 = vmul.f32 %v713, %v741
        %v767 = vmul.f32 %v716, %v741
        %v768 = vmul.f32 %v719, %v741
        %v769 = vmul.f32 %v722, %v741
        %v770 = vmul.f32 %v725, %v741
        %v771 = vmul.f32 %v728, %v741
        %v772 = vmul.f32 %v731, %v741
        %v773 = vmul.f32 %v734, %v741
        %v774 = vsub.f32 %v543, %v742
        %v775 = vsub.f32 %v546, %v743
        %v776 = vsub.f32 %v549, %v744
        %v777 = vsub.f32 %v552, %v745
        %v778 = vsub.f32 %v555, %v746
        %v779 = vsub.f32 %v558, %v747
        %v780 = vsub.f32 %v561, %v748
        %v781 = vsub.f32 %v564, %v749
        %v782 = vsub.f32 %v567, %v750
        %v783 = vsub.f32 %v570, %v751
        %v784 = vsub.f32 %v573, %v752
        %v785 = vsub.f32 %v576, %v753
        %v786 = vsub.f32 %v579, %v754
        %v787 = vsub.f32 %v582, %v755
        %v788 = vsub.f32 %v585, %v756
        %v789 = vsub.f32 %v588, %v757
        %v790 = vsub.f32 %v591, %v758
        %v791 = vsub.f32 %v594, %v759
        %v792 = vsub.f32 %v597, %v760
        %v793 = vsub.f32 %v600, %v761
        %v794 = vsub.f32 %v603, %v762
        %v795 = vsub.f32 %v606, %v763
        %v796 = vsub.f32 %v609, %v764
        %v797 = vsub.f32 %v612, %v765
        %v798 = vsub.f32 %v615, %v766
        %v799 = vsub.f32 %v618, %v767
        %v800 = vsub.f32 %v621, %v768
        %v801 = vsub.f32 %v624, %v769
        %v802 = vsub.f32 %v627, %v770
        %v803 = vsub.f32 %v630, %v771
        %v804 = vsub.f32 %v633, %v772
        %v805 = vsub.f32 %v636, %v773
        %v806 = vmul.f32 %v774, %v774
        %v807 = vmul.f32 %v775, %v775
        %v808 = vmul.f32 %v776, %v776
        %v809 = vmul.f32 %v777, %v777
        %v810 = vmul.f32 %v778, %v778
        %v811 = vmul.f32 %v779, %v779
        %v812 = vmul.f32 %v780, %v780
        %v813 = vmul.f32 %v781, %v781
        %v814 = vmul.f32 %v782, %v782
        %v815 = vmul.f32 %v783, %v783
        %v816 = vmul.f32 %v784, %v784
        %v817 = vmul.f32 %v785, %v785
        %v818 = vmul.f32 %v786, %v786
        %v819 = vmul.f32 %v787, %v787
        %v820 = vmul.f32 %v788, %v788
        %v821 = vmul.f32 %v789, %v789
        %v822 = vmul.f32 %v790, %v790
        %v823 = vmul.f32 %v791, %v791
        %v824 = vmul.f32 %v792, %v792
        %v825 = vmul.f32 %v793, %v793
        %v826 = vmul.f32 %v794, %v794
        %v827 = vmul.f32 %v795, %v795
        %v828 = vmul.f32 %v796, %v796
        %v829 = vmul.f32 %v797, %v797
        %v830 = vmul.f32 %v798, %v798
        %v831 = vmul.f32 %v799, %v799
        %v832 = vmul.f32 %v800, %v800
        %v833 = vmul.f32 %v801, %v801
        %v834 = vmul.f32 %v802, %v802
        %v835 = vmul.f32 %v803, %v803
        %v836 = vmul.f32 %v804, %v804
        %v837 = vmul.f32 %v805, %v805
        %v838 = vsel %vm638, %v806, 0.0
        %839 = vadd.xlane.f32.xlu0 %v838
        %v840 = vpop.xlane.xlu0 %839
        %v841 = vsel %vm638, %v807, 0.0
        %842 = vadd.xlane.f32.xlu0 %v841
        %v843 = vpop.xlane.xlu0 %842
        %v844 = vsel %vm638, %v808, 0.0
        %845 = vadd.xlane.f32.xlu0 %v844
        %v846 = vpop.xlane.xlu0 %845
        %v847 = vsel %vm638, %v809, 0.0
        %848 = vadd.xlane.f32.xlu0 %v847
        %v849 = vpop.xlane.xlu0 %848
        %v850 = vsel %vm638, %v810, 0.0
        %851 = vadd.xlane.f32.xlu0 %v850
        %v852 = vpop.xlane.xlu0 %851
        %v853 = vsel %vm638, %v811, 0.0
        %854 = vadd.xlane.f32.xlu0 %v853
        %v855 = vpop.xlane.xlu0 %854
        %v856 = vsel %vm638, %v812, 0.0
        %857 = vadd.xlane.f32.xlu0 %v856
        %v858 = vpop.xlane.xlu0 %857
        %v859 = vsel %vm638, %v813, 0.0
        %860 = vadd.xlane.f32.xlu0 %v859
        %v861 = vpop.xlane.xlu0 %860
        %v862 = vsel %vm638, %v814, 0.0
        %863 = vadd.xlane.f32.xlu0 %v862
        %v864 = vpop.xlane.xlu0 %863
        %v865 = vsel %vm638, %v815, 0.0
        %866 = vadd.xlane.f32.xlu0 %v865
        %v867 = vpop.xlane.xlu0 %866
        %v868 = vsel %vm638, %v816, 0.0
        %869 = vadd.xlane.f32.xlu0 %v868
        %v870 = vpop.xlane.xlu0 %869
        %v871 = vsel %vm638, %v817, 0.0
        %872 = vadd.xlane.f32.xlu0 %v871
        %v873 = vpop.xlane.xlu0 %872
        %v874 = vsel %vm638, %v818, 0.0
        %875 = vadd.xlane.f32.xlu0 %v874
        %v876 = vpop.xlane.xlu0 %875
        %v877 = vsel %vm638, %v819, 0.0
        %878 = vadd.xlane.f32.xlu0 %v877
        %v879 = vpop.xlane.xlu0 %878
        %v880 = vsel %vm638, %v820, 0.0
        %881 = vadd.xlane.f32.xlu0 %v880
        %v882 = vpop.xlane.xlu0 %881
        %v883 = vsel %vm638, %v821, 0.0
        %884 = vadd.xlane.f32.xlu0 %v883
        %v885 = vpop.xlane.xlu0 %884
        %v886 = vsel %vm638, %v822, 0.0
        %887 = vadd.xlane.f32.xlu0 %v886
        %v888 = vpop.xlane.xlu0 %887
        %v889 = vsel %vm638, %v823, 0.0
        %890 = vadd.xlane.f32.xlu0 %v889
        %v891 = vpop.xlane.xlu0 %890
        %v892 = vsel %vm638, %v824, 0.0
        %893 = vadd.xlane.f32.xlu0 %v892
        %v894 = vpop.xlane.xlu0 %893
        %v895 = vsel %vm638, %v825, 0.0
        %896 = vadd.xlane.f32.xlu0 %v895
        %v897 = vpop.xlane.xlu0 %896
        %v898 = vsel %vm638, %v826, 0.0
        %899 = vadd.xlane.f32.xlu0 %v898
        %v900 = vpop.xlane.xlu0 %899
        %v901 = vsel %vm638, %v827, 0.0
        %902 = vadd.xlane.f32.xlu0 %v901
        %v903 = vpop.xlane.xlu0 %902
        %v904 = vsel %vm638, %v828, 0.0
        %905 = vadd.xlane.f32.xlu0 %v904
        %v906 = vpop.xlane.xlu0 %905
        %v907 = vsel %vm638, %v829, 0.0
        %908 = vadd.xlane.f32.xlu0 %v907
        %v909 = vpop.xlane.xlu0 %908
        %v910 = vsel %vm638, %v830, 0.0
        %911 = vadd.xlane.f32.xlu0 %v910
        %v912 = vpop.xlane.xlu0 %911
        %v913 = vsel %vm638, %v831, 0.0
        %914 = vadd.xlane.f32.xlu0 %v913
        %v915 = vpop.xlane.xlu0 %914
        %v916 = vsel %vm638, %v832, 0.0
        %917 = vadd.xlane.f32.xlu0 %v916
        %v918 = vpop.xlane.xlu0 %917
        %v919 = vsel %vm638, %v833, 0.0
        %920 = vadd.xlane.f32.xlu0 %v919
        %v921 = vpop.xlane.xlu0 %920
        %v922 = vsel %vm638, %v834, 0.0
        %923 = vadd.xlane.f32.xlu0 %v922
        %v924 = vpop.xlane.xlu0 %923
        %v925 = vsel %vm638, %v835, 0.0
        %926 = vadd.xlane.f32.xlu0 %v925
        %v927 = vpop.xlane.xlu0 %926
        %v928 = vsel %vm638, %v836, 0.0
        %929 = vadd.xlane.f32.xlu0 %v928
        %v930 = vpop.xlane.xlu0 %929
        %v931 = vsel %vm638, %v837, 0.0
        %932 = vadd.xlane.f32.xlu0 %v931
        %v933 = vpop.xlane.xlu0 %932
        %v934 = vmul.f32 %v840, %v741
        %v935 = vmul.f32 %v843, %v741
        %v936 = vmul.f32 %v846, %v741
        %v937 = vmul.f32 %v849, %v741
        %v938 = vmul.f32 %v852, %v741
        %v939 = vmul.f32 %v855, %v741
        %v940 = vmul.f32 %v858, %v741
        %v941 = vmul.f32 %v861, %v741
        %v942 = vmul.f32 %v864, %v741
        %v943 = vmul.f32 %v867, %v741
        %v944 = vmul.f32 %v870, %v741
        %v945 = vmul.f32 %v873, %v741
        %v946 = vmul.f32 %v876, %v741
        %v947 = vmul.f32 %v879, %v741
        %v948 = vmul.f32 %v882, %v741
        %v949 = vmul.f32 %v885, %v741
        %v950 = vmul.f32 %v888, %v741
        %v951 = vmul.f32 %v891, %v741
        %v952 = vmul.f32 %v894, %v741
        %v953 = vmul.f32 %v897, %v741
        %v954 = vmul.f32 %v900, %v741
        %v955 = vmul.f32 %v903, %v741
        %v956 = vmul.f32 %v906, %v741
        %v957 = vmul.f32 %v909, %v741
        %v958 = vmul.f32 %v912, %v741
        %v959 = vmul.f32 %v915, %v741
        %v960 = vmul.f32 %v918, %v741
        %v961 = vmul.f32 %v921, %v741
        %v962 = vmul.f32 %v924, %v741
        %v963 = vmul.f32 %v927, %v741
        %v964 = vmul.f32 %v930, %v741
        %v965 = vmul.f32 %v933, %v741
        %v966 = vadd.f32 %v934, 1e-05
        %v967 = vadd.f32 %v935, 1e-05
        %v968 = vadd.f32 %v936, 1e-05
        %v969 = vadd.f32 %v937, 1e-05
        %v970 = vadd.f32 %v938, 1e-05
        %v971 = vadd.f32 %v939, 1e-05
        %v972 = vadd.f32 %v940, 1e-05
        %v973 = vadd.f32 %v941, 1e-05
        %v974 = vadd.f32 %v942, 1e-05
        %v975 = vadd.f32 %v943, 1e-05
        %v976 = vadd.f32 %v944, 1e-05
        %v977 = vadd.f32 %v945, 1e-05
        %v978 = vadd.f32 %v946, 1e-05
        %v979 = vadd.f32 %v947, 1e-05
        %v980 = vadd.f32 %v948, 1e-05
        %v981 = vadd.f32 %v949, 1e-05
        %v982 = vadd.f32 %v950, 1e-05
        %v983 = vadd.f32 %v951, 1e-05
        %v984 = vadd.f32 %v952, 1e-05
        %v985 = vadd.f32 %v953, 1e-05
        %v986 = vadd.f32 %v954, 1e-05
        %v987 = vadd.f32 %v955, 1e-05
        %v988 = vadd.f32 %v956, 1e-05
        %v989 = vadd.f32 %v957, 1e-05
        %v990 = vadd.f32 %v958, 1e-05
        %v991 = vadd.f32 %v959, 1e-05
        %v992 = vadd.f32 %v960, 1e-05
        %v993 = vadd.f32 %v961, 1e-05
        %v994 = vadd.f32 %v962, 1e-05
        %v995 = vadd.f32 %v963, 1e-05
        %v996 = vadd.f32 %v964, 1e-05
        %v997 = vadd.f32 %v965, 1e-05
        %v998 = vrsqrt.pop %v966
        %v999 = vmul.f32 %v998, %v966
        %v1000 = vmul.f32 %v999, %v998
        %v1001 = vmul.f32 0.5, %v1000
        %v1002 = vsub.f32 1.5, %v1001
        %v1003 = vmul.f32 %v998, %v1002
        %vm1004 = vweird.f32 %v966
        %vm1005 = vweird.f32 %v998
        %vm1006 = vmor %vm1004, %vm1005
        %v1007 = vsel %vm1006, %v998, %v1003
        %v1008 = vrsqrt.pop %v967
        %v1009 = vmul.f32 %v1008, %v967
        %v1010 = vmul.f32 %v1009, %v1008
        %v1011 = vmul.f32 0.5, %v1010
        %v1012 = vsub.f32 1.5, %v1011
        %v1013 = vmul.f32 %v1008, %v1012
        %vm1014 = vweird.f32 %v967
        %vm1015 = vweird.f32 %v1008
        %vm1016 = vmor %vm1014, %vm1015
        %v1017 = vsel %vm1016, %v1008, %v1013
        %v1018 = vrsqrt.pop %v968
        %v1019 = vmul.f32 %v1018, %v968
        %v1020 = vmul.f32 %v1019, %v1018
        %v1021 = vmul.f32 0.5, %v1020
        %v1022 = vsub.f32 1.5, %v1021
        %v1023 = vmul.f32 %v1018, %v1022
        %vm1024 = vweird.f32 %v968
        %vm1025 = vweird.f32 %v1018
        %vm1026 = vmor %vm1024, %vm1025
        %v1027 = vsel %vm1026, %v1018, %v1023
        %v1028 = vrsqrt.pop %v969
        %v1029 = vmul.f32 %v1028, %v969
        %v1030 = vmul.f32 %v1029, %v1028
        %v1031 = vmul.f32 0.5, %v1030
        %v1032 = vsub.f32 1.5, %v1031
        %v1033 = vmul.f32 %v1028, %v1032
        %vm1034 = vweird.f32 %v969
        %vm1035 = vweird.f32 %v1028
        %vm1036 = vmor %vm1034, %vm1035
        %v1037 = vsel %vm1036, %v1028, %v1033
        %v1038 = vrsqrt.pop %v970
        %v1039 = vmul.f32 %v1038, %v970
        %v1040 = vmul.f32 %v1039, %v1038
        %v1041 = vmul.f32 0.5, %v1040
        %v1042 = vsub.f32 1.5, %v1041
        %v1043 = vmul.f32 %v1038, %v1042
        %vm1044 = vweird.f32 %v970
        %vm1045 = vweird.f32 %v1038
        %vm1046 = vmor %vm1044, %vm1045
        %v1047 = vsel %vm1046, %v1038, %v1043
        %v1048 = vrsqrt.pop %v971
        %v1049 = vmul.f32 %v1048, %v971
        %v1050 = vmul.f32 %v1049, %v1048
        %v1051 = vmul.f32 0.5, %v1050
        %v1052 = vsub.f32 1.5, %v1051
        %v1053 = vmul.f32 %v1048, %v1052
        %vm1054 = vweird.f32 %v971
        %vm1055 = vweird.f32 %v1048
        %vm1056 = vmor %vm1054, %vm1055
        %v1057 = vsel %vm1056, %v1048, %v1053
        %v1058 = vrsqrt.pop %v972
        %v1059 = vmul.f32 %v1058, %v972
        %v1060 = vmul.f32 %v1059, %v1058
        %v1061 = vmul.f32 0.5, %v1060
        %v1062 = vsub.f32 1.5, %v1061
        %v1063 = vmul.f32 %v1058, %v1062
        %vm1064 = vweird.f32 %v972
        %vm1065 = vweird.f32 %v1058
        %vm1066 = vmor %vm1064, %vm1065
        %v1067 = vsel %vm1066, %v1058, %v1063
        %v1068 = vrsqrt.pop %v973
        %v1069 = vmul.f32 %v1068, %v973
        %v1070 = vmul.f32 %v1069, %v1068
        %v1071 = vmul.f32 0.5, %v1070
        %v1072 = vsub.f32 1.5, %v1071
        %v1073 = vmul.f32 %v1068, %v1072
        %vm1074 = vweird.f32 %v973
        %vm1075 = vweird.f32 %v1068
        %vm1076 = vmor %vm1074, %vm1075
        %v1077 = vsel %vm1076, %v1068, %v1073
        %v1078 = vrsqrt.pop %v974
        %v1079 = vmul.f32 %v1078, %v974
        %v1080 = vmul.f32 %v1079, %v1078
        %v1081 = vmul.f32 0.5, %v1080
        %v1082 = vsub.f32 1.5, %v1081
        %v1083 = vmul.f32 %v1078, %v1082
        %vm1084 = vweird.f32 %v974
        %vm1085 = vweird.f32 %v1078
        %vm1086 = vmor %vm1084, %vm1085
        %v1087 = vsel %vm1086, %v1078, %v1083
        %v1088 = vrsqrt.pop %v975
        %v1089 = vmul.f32 %v1088, %v975
        %v1090 = vmul.f32 %v1089, %v1088
        %v1091 = vmul.f32 0.5, %v1090
        %v1092 = vsub.f32 1.5, %v1091
        %v1093 = vmul.f32 %v1088, %v1092
        %vm1094 = vweird.f32 %v975
        %vm1095 = vweird.f32 %v1088
        %vm1096 = vmor %vm1094, %vm1095
        %v1097 = vsel %vm1096, %v1088, %v1093
        %v1098 = vrsqrt.pop %v976
        %v1099 = vmul.f32 %v1098, %v976
        %v1100 = vmul.f32 %v1099, %v1098
        %v1101 = vmul.f32 0.5, %v1100
        %v1102 = vsub.f32 1.5, %v1101
        %v1103 = vmul.f32 %v1098, %v1102
        %vm1104 = vweird.f32 %v976
        %vm1105 = vweird.f32 %v1098
        %vm1106 = vmor %vm1104, %vm1105
        %v1107 = vsel %vm1106, %v1098, %v1103
        %v1108 = vrsqrt.pop %v977
        %v1109 = vmul.f32 %v1108, %v977
        %v1110 = vmul.f32 %v1109, %v1108
        %v1111 = vmul.f32 0.5, %v1110
        %v1112 = vsub.f32 1.5, %v1111
        %v1113 = vmul.f32 %v1108, %v1112
        %vm1114 = vweird.f32 %v977
        %vm1115 = vweird.f32 %v1108
        %vm1116 = vmor %vm1114, %vm1115
        %v1117 = vsel %vm1116, %v1108, %v1113
        %v1118 = vrsqrt.pop %v978
        %v1119 = vmul.f32 %v1118, %v978
        %v1120 = vmul.f32 %v1119, %v1118
        %v1121 = vmul.f32 0.5, %v1120
        %v1122 = vsub.f32 1.5, %v1121
        %v1123 = vmul.f32 %v1118, %v1122
        %vm1124 = vweird.f32 %v978
        %vm1125 = vweird.f32 %v1118
        %vm1126 = vmor %vm1124, %vm1125
        %v1127 = vsel %vm1126, %v1118, %v1123
        %v1128 = vrsqrt.pop %v979
        %v1129 = vmul.f32 %v1128, %v979
        %v1130 = vmul.f32 %v1129, %v1128
        %v1131 = vmul.f32 0.5, %v1130
        %v1132 = vsub.f32 1.5, %v1131
        %v1133 = vmul.f32 %v1128, %v1132
        %vm1134 = vweird.f32 %v979
        %vm1135 = vweird.f32 %v1128
        %vm1136 = vmor %vm1134, %vm1135
        %v1137 = vsel %vm1136, %v1128, %v1133
        %v1138 = vrsqrt.pop %v980
        %v1139 = vmul.f32 %v1138, %v980
        %v1140 = vmul.f32 %v1139, %v1138
        %v1141 = vmul.f32 0.5, %v1140
        %v1142 = vsub.f32 1.5, %v1141
        %v1143 = vmul.f32 %v1138, %v1142
        %vm1144 = vweird.f32 %v980
        %vm1145 = vweird.f32 %v1138
        %vm1146 = vmor %vm1144, %vm1145
        %v1147 = vsel %vm1146, %v1138, %v1143
        %v1148 = vrsqrt.pop %v981
        %v1149 = vmul.f32 %v1148, %v981
        %v1150 = vmul.f32 %v1149, %v1148
        %v1151 = vmul.f32 0.5, %v1150
        %v1152 = vsub.f32 1.5, %v1151
        %v1153 = vmul.f32 %v1148, %v1152
        %vm1154 = vweird.f32 %v981
        %vm1155 = vweird.f32 %v1148
        %vm1156 = vmor %vm1154, %vm1155
        %v1157 = vsel %vm1156, %v1148, %v1153
        %v1158 = vrsqrt.pop %v982
        %v1159 = vmul.f32 %v1158, %v982
        %v1160 = vmul.f32 %v1159, %v1158
        %v1161 = vmul.f32 0.5, %v1160
        %v1162 = vsub.f32 1.5, %v1161
        %v1163 = vmul.f32 %v1158, %v1162
        %vm1164 = vweird.f32 %v982
        %vm1165 = vweird.f32 %v1158
        %vm1166 = vmor %vm1164, %vm1165
        %v1167 = vsel %vm1166, %v1158, %v1163
        %v1168 = vrsqrt.pop %v983
        %v1169 = vmul.f32 %v1168, %v983
        %v1170 = vmul.f32 %v1169, %v1168
        %v1171 = vmul.f32 0.5, %v1170
        %v1172 = vsub.f32 1.5, %v1171
        %v1173 = vmul.f32 %v1168, %v1172
        %vm1174 = vweird.f32 %v983
        %vm1175 = vweird.f32 %v1168
        %vm1176 = vmor %vm1174, %vm1175
        %v1177 = vsel %vm1176, %v1168, %v1173
        %v1178 = vrsqrt.pop %v984
        %v1179 = vmul.f32 %v1178, %v984
        %v1180 = vmul.f32 %v1179, %v1178
        %v1181 = vmul.f32 0.5, %v1180
        %v1182 = vsub.f32 1.5, %v1181
        %v1183 = vmul.f32 %v1178, %v1182
        %vm1184 = vweird.f32 %v984
        %vm1185 = vweird.f32 %v1178
        %vm1186 = vmor %vm1184, %vm1185
        %v1187 = vsel %vm1186, %v1178, %v1183
        %v1188 = vrsqrt.pop %v985
        %v1189 = vmul.f32 %v1188, %v985
        %v1190 = vmul.f32 %v1189, %v1188
        %v1191 = vmul.f32 0.5, %v1190
        %v1192 = vsub.f32 1.5, %v1191
        %v1193 = vmul.f32 %v1188, %v1192
        %vm1194 = vweird.f32 %v985
        %vm1195 = vweird.f32 %v1188
        %vm1196 = vmor %vm1194, %vm1195
        %v1197 = vsel %vm1196, %v1188, %v1193
        %v1198 = vrsqrt.pop %v986
        %v1199 = vmul.f32 %v1198, %v986
        %v1200 = vmul.f32 %v1199, %v1198
        %v1201 = vmul.f32 0.5, %v1200
        %v1202 = vsub.f32 1.5, %v1201
        %v1203 = vmul.f32 %v1198, %v1202
        %vm1204 = vweird.f32 %v986
        %vm1205 = vweird.f32 %v1198
        %vm1206 = vmor %vm1204, %vm1205
        %v1207 = vsel %vm1206, %v1198, %v1203
        %v1208 = vrsqrt.pop %v987
        %v1209 = vmul.f32 %v1208, %v987
        %v1210 = vmul.f32 %v1209, %v1208
        %v1211 = vmul.f32 0.5, %v1210
        %v1212 = vsub.f32 1.5, %v1211
        %v1213 = vmul.f32 %v1208, %v1212
        %vm1214 = vweird.f32 %v987
        %vm1215 = vweird.f32 %v1208
        %vm1216 = vmor %vm1214, %vm1215
        %v1217 = vsel %vm1216, %v1208, %v1213
        %v1218 = vrsqrt.pop %v988
        %v1219 = vmul.f32 %v1218, %v988
        %v1220 = vmul.f32 %v1219, %v1218
        %v1221 = vmul.f32 0.5, %v1220
        %v1222 = vsub.f32 1.5, %v1221
        %v1223 = vmul.f32 %v1218, %v1222
        %vm1224 = vweird.f32 %v988
        %vm1225 = vweird.f32 %v1218
        %vm1226 = vmor %vm1224, %vm1225
        %v1227 = vsel %vm1226, %v1218, %v1223
        %v1228 = vrsqrt.pop %v989
        %v1229 = vmul.f32 %v1228, %v989
        %v1230 = vmul.f32 %v1229, %v1228
        %v1231 = vmul.f32 0.5, %v1230
        %v1232 = vsub.f32 1.5, %v1231
        %v1233 = vmul.f32 %v1228, %v1232
        %vm1234 = vweird.f32 %v989
        %vm1235 = vweird.f32 %v1228
        %vm1236 = vmor %vm1234, %vm1235
        %v1237 = vsel %vm1236, %v1228, %v1233
        %v1238 = vrsqrt.pop %v990
        %v1239 = vmul.f32 %v1238, %v990
        %v1240 = vmul.f32 %v1239, %v1238
        %v1241 = vmul.f32 0.5, %v1240
        %v1242 = vsub.f32 1.5, %v1241
        %v1243 = vmul.f32 %v1238, %v1242
        %vm1244 = vweird.f32 %v990
        %vm1245 = vweird.f32 %v1238
        %vm1246 = vmor %vm1244, %vm1245
        %v1247 = vsel %vm1246, %v1238, %v1243
        %v1248 = vrsqrt.pop %v991
        %v1249 = vmul.f32 %v1248, %v991
        %v1250 = vmul.f32 %v1249, %v1248
        %v1251 = vmul.f32 0.5, %v1250
        %v1252 = vsub.f32 1.5, %v1251
        %v1253 = vmul.f32 %v1248, %v1252
        %vm1254 = vweird.f32 %v991
        %vm1255 = vweird.f32 %v1248
        %vm1256 = vmor %vm1254, %vm1255
        %v1257 = vsel %vm1256, %v1248, %v1253
        %v1258 = vrsqrt.pop %v992
        %v1259 = vmul.f32 %v1258, %v992
        %v1260 = vmul.f32 %v1259, %v1258
        %v1261 = vmul.f32 0.5, %v1260
        %v1262 = vsub.f32 1.5, %v1261
        %v1263 = vmul.f32 %v1258, %v1262
        %vm1264 = vweird.f32 %v992
        %vm1265 = vweird.f32 %v1258
        %vm1266 = vmor %vm1264, %vm1265
        %v1267 = vsel %vm1266, %v1258, %v1263
        %v1268 = vrsqrt.pop %v993
        %v1269 = vmul.f32 %v1268, %v993
        %v1270 = vmul.f32 %v1269, %v1268
        %v1271 = vmul.f32 0.5, %v1270
        %v1272 = vsub.f32 1.5, %v1271
        %v1273 = vmul.f32 %v1268, %v1272
        %vm1274 = vweird.f32 %v993
        %vm1275 = vweird.f32 %v1268
        %vm1276 = vmor %vm1274, %vm1275
        %v1277 = vsel %vm1276, %v1268, %v1273
        %v1278 = vrsqrt.pop %v994
        %v1279 = vmul.f32 %v1278, %v994
        %v1280 = vmul.f32 %v1279, %v1278
        %v1281 = vmul.f32 0.5, %v1280
        %v1282 = vsub.f32 1.5, %v1281
        %v1283 = vmul.f32 %v1278, %v1282
        %vm1284 = vweird.f32 %v994
        %vm1285 = vweird.f32 %v1278
        %vm1286 = vmor %vm1284, %vm1285
        %v1287 = vsel %vm1286, %v1278, %v1283
        %v1288 = vrsqrt.pop %v995
        %v1289 = vmul.f32 %v1288, %v995
        %v1290 = vmul.f32 %v1289, %v1288
        %v1291 = vmul.f32 0.5, %v1290
        %v1292 = vsub.f32 1.5, %v1291
        %v1293 = vmul.f32 %v1288, %v1292
        %vm1294 = vweird.f32 %v995
        %vm1295 = vweird.f32 %v1288
        %vm1296 = vmor %vm1294, %vm1295
        %v1297 = vsel %vm1296, %v1288, %v1293
        %v1298 = vrsqrt.pop %v996
        %v1299 = vmul.f32 %v1298, %v996
        %v1300 = vmul.f32 %v1299, %v1298
        %v1301 = vmul.f32 0.5, %v1300
        %v1302 = vsub.f32 1.5, %v1301
        %v1303 = vmul.f32 %v1298, %v1302
        %vm1304 = vweird.f32 %v996
        %vm1305 = vweird.f32 %v1298
        %vm1306 = vmor %vm1304, %vm1305
        %v1307 = vsel %vm1306, %v1298, %v1303
        %v1308 = vrsqrt.pop %v997
        %v1309 = vmul.f32 %v1308, %v997
        %v1310 = vmul.f32 %v1309, %v1308
        %v1311 = vmul.f32 0.5, %v1310
        %v1312 = vsub.f32 1.5, %v1311
        %v1313 = vmul.f32 %v1308, %v1312
        %vm1314 = vweird.f32 %v997
        %vm1315 = vweird.f32 %v1308
        %vm1316 = vmor %vm1314, %vm1315
        %v1317 = vsel %vm1316, %v1308, %v1313
        %v1318 = vld [vmem:[#allocation7] sm:$0x1]
        %v1320 = vperm.slane %v1318, 0
        %v1322 = vmul.f32 %v1007, %v1320
        %v1323 = vmul.f32 %v1017, %v1320
        %v1324 = vmul.f32 %v1027, %v1320
        %v1325 = vmul.f32 %v1037, %v1320
        %v1326 = vmul.f32 %v1047, %v1320
        %v1327 = vmul.f32 %v1057, %v1320
        %v1328 = vmul.f32 %v1067, %v1320
        %v1329 = vmul.f32 %v1077, %v1320
        %v1330 = vmul.f32 %v1087, %v1320
        %v1331 = vmul.f32 %v1097, %v1320
        %v1332 = vmul.f32 %v1107, %v1320
        %v1333 = vmul.f32 %v1117, %v1320
        %v1334 = vmul.f32 %v1127, %v1320
        %v1335 = vmul.f32 %v1137, %v1320
        %v1336 = vmul.f32 %v1147, %v1320
        %v1337 = vmul.f32 %v1157, %v1320
        %v1338 = vmul.f32 %v1167, %v1320
        %v1339 = vmul.f32 %v1177, %v1320
        %v1340 = vmul.f32 %v1187, %v1320
        %v1341 = vmul.f32 %v1197, %v1320
        %v1342 = vmul.f32 %v1207, %v1320
        %v1343 = vmul.f32 %v1217, %v1320
        %v1344 = vmul.f32 %v1227, %v1320
        %v1345 = vmul.f32 %v1237, %v1320
        %v1346 = vmul.f32 %v1247, %v1320
        %v1347 = vmul.f32 %v1257, %v1320
        %v1348 = vmul.f32 %v1267, %v1320
        %v1349 = vmul.f32 %v1277, %v1320
        %v1350 = vmul.f32 %v1287, %v1320
        %v1351 = vmul.f32 %v1297, %v1320
        %v1352 = vmul.f32 %v1307, %v1320
        %v1353 = vmul.f32 %v1317, %v1320
        %v1354 = vmul.f32 %v774, %v1322
        %v1355 = vmul.f32 %v775, %v1323
        %v1356 = vmul.f32 %v776, %v1324
        %v1357 = vmul.f32 %v777, %v1325
        %v1358 = vmul.f32 %v778, %v1326
        %v1359 = vmul.f32 %v779, %v1327
        %v1360 = vmul.f32 %v780, %v1328
        %v1361 = vmul.f32 %v781, %v1329
        %v1362 = vmul.f32 %v782, %v1330
        %v1363 = vmul.f32 %v783, %v1331
        %v1364 = vmul.f32 %v784, %v1332
        %v1365 = vmul.f32 %v785, %v1333
        %v1366 = vmul.f32 %v786, %v1334
        %v1367 = vmul.f32 %v787, %v1335
        %v1368 = vmul.f32 %v788, %v1336
        %v1369 = vmul.f32 %v789, %v1337
        %v1370 = vmul.f32 %v790, %v1338
        %v1371 = vmul.f32 %v791, %v1339
        %v1372 = vmul.f32 %v792, %v1340
        %v1373 = vmul.f32 %v793, %v1341
        %v1374 = vmul.f32 %v794, %v1342
        %v1375 = vmul.f32 %v795, %v1343
        %v1376 = vmul.f32 %v796, %v1344
        %v1377 = vmul.f32 %v797, %v1345
        %v1378 = vmul.f32 %v798, %v1346
        %v1379 = vmul.f32 %v799, %v1347
        %v1380 = vmul.f32 %v800, %v1348
        %v1381 = vmul.f32 %v801, %v1349
        %v1382 = vmul.f32 %v802, %v1350
        %v1383 = vmul.f32 %v803, %v1351
        %v1384 = vmul.f32 %v804, %v1352
        %v1385 = vmul.f32 %v805, %v1353
        %v1386 = vld [vmem:[#allocation8] sm:$0x1]
        %v1388 = vperm.slane %v1386, 0
        %v1390 = vadd.f32 %v1354, %v1388
        %v1391 = vadd.f32 %v1355, %v1388
        %v1392 = vadd.f32 %v1356, %v1388
        %v1393 = vadd.f32 %v1357, %v1388
        %v1394 = vadd.f32 %v1358, %v1388
        %v1395 = vadd.f32 %v1359, %v1388
        %v1396 = vadd.f32 %v1360, %v1388
        %v1397 = vadd.f32 %v1361, %v1388
        %v1398 = vadd.f32 %v1362, %v1388
        %v1399 = vadd.f32 %v1363, %v1388
        %v1400 = vadd.f32 %v1364, %v1388
        %v1401 = vadd.f32 %v1365, %v1388
        %v1402 = vadd.f32 %v1366, %v1388
        %v1403 = vadd.f32 %v1367, %v1388
        %v1404 = vadd.f32 %v1368, %v1388
        %v1405 = vadd.f32 %v1369, %v1388
        %v1406 = vadd.f32 %v1370, %v1388
        %v1407 = vadd.f32 %v1371, %v1388
        %v1408 = vadd.f32 %v1372, %v1388
        %v1409 = vadd.f32 %v1373, %v1388
        %v1410 = vadd.f32 %v1374, %v1388
        %v1411 = vadd.f32 %v1375, %v1388
        %v1412 = vadd.f32 %v1376, %v1388
        %v1413 = vadd.f32 %v1377, %v1388
        %v1414 = vadd.f32 %v1378, %v1388
        %v1415 = vadd.f32 %v1379, %v1388
        %v1416 = vadd.f32 %v1380, %v1388
        %v1417 = vadd.f32 %v1381, %v1388
        %v1418 = vadd.f32 %v1382, %v1388
        %v1419 = vadd.f32 %v1383, %v1388
        %v1420 = vadd.f32 %v1384, %v1388
        %v1421 = vadd.f32 %v1385, %v1388
        %v1422 = vmax.f32 %v1390, 0.0
        %v1423 = vmax.f32 %v1391, 0.0
        %v1424 = vmax.f32 %v1392, 0.0
        %v1425 = vmax.f32 %v1393, 0.0
        %v1426 = vmax.f32 %v1394, 0.0
        %v1427 = vmax.f32 %v1395, 0.0
        %v1428 = vmax.f32 %v1396, 0.0
        %v1429 = vmax.f32 %v1397, 0.0
        %v1430 = vmax.f32 %v1398, 0.0
        %v1431 = vmax.f32 %v1399, 0.0
        %v1432 = vmax.f32 %v1400, 0.0
        %v1433 = vmax.f32 %v1401, 0.0
        %v1434 = vmax.f32 %v1402, 0.0
        %v1435 = vmax.f32 %v1403, 0.0
        %v1436 = vmax.f32 %v1404, 0.0
        %v1437 = vmax.f32 %v1405, 0.0
        %v1438 = vmax.f32 %v1406, 0.0
        %v1439 = vmax.f32 %v1407, 0.0
        %v1440 = vmax.f32 %v1408, 0.0
        %v1441 = vmax.f32 %v1409, 0.0
        %v1442 = vmax.f32 %v1410, 0.0
        %v1443 = vmax.f32 %v1411, 0.0
        %v1444 = vmax.f32 %v1412, 0.0
        %v1445 = vmax.f32 %v1413, 0.0
        %v1446 = vmax.f32 %v1414, 0.0
        %v1447 = vmax.f32 %v1415, 0.0
        %v1448 = vmax.f32 %v1416, 0.0
        %v1449 = vmax.f32 %v1417, 0.0
        %v1450 = vmax.f32 %v1418, 0.0
        %v1451 = vmax.f32 %v1419, 0.0
        %v1452 = vmax.f32 %v1420, 0.0
        %v1453 = vmax.f32 %v1421, 0.0
        %v1454 = vld [vmem:[%s6] sm:$0xff]
        %v1455 = vld [vmem:[%s6 + $0x8] sm:$0xff]
        %v1456 = vld [vmem:[%s6 + $0x10] sm:$0xff]
        %v1457 = vld [vmem:[%s6 + $0x18] sm:$0xff]
        %v1458 = vld [vmem:[%s6 + $0x20] sm:$0xff]
        %v1459 = vld [vmem:[%s6 + $0x28] sm:$0xff]
        %v1460 = vld [vmem:[%s6 + $0x30] sm:$0xff]
        %v1461 = vld [vmem:[%s6 + $0x38] sm:$0xff]
        %v1462 = vld [vmem:[%s7] sm:$0x3]
        %v1464 = vperm.slane %v1462, 0
        %v1465 = vperm.slane %v1462, 1
        %v1469 = vsel %vm638, %v1422, 0
        %v1472 = vsel %vm638, %v1423, 0
        %v1475 = vsel %vm638, %v1424, 0
        %v1478 = vsel %vm638, %v1425, 0
        %v1481 = vsel %vm638, %v1426, 0
        %v1484 = vsel %vm638, %v1427, 0
        %v1487 = vsel %vm638, %v1428, 0
        %v1490 = vsel %vm638, %v1429, 0
        %v1493 = vsel %vm638, %v1430, 0
        %v1496 = vsel %vm638, %v1431, 0
        %v1499 = vsel %vm638, %v1432, 0
        %v1502 = vsel %vm638, %v1433, 0
        %v1505 = vsel %vm638, %v1434, 0
        %v1508 = vsel %vm638, %v1435, 0
        %v1511 = vsel %vm638, %v1436, 0
        %v1514 = vsel %vm638, %v1437, 0
        %v1517 = vsel %vm638, %v1438, 0
        %v1520 = vsel %vm638, %v1439, 0
        %v1523 = vsel %vm638, %v1440, 0
        %v1526 = vsel %vm638, %v1441, 0
        %v1529 = vsel %vm638, %v1442, 0
        %v1532 = vsel %vm638, %v1443, 0
        %v1535 = vsel %vm638, %v1444, 0
        %v1538 = vsel %vm638, %v1445, 0
        %v1541 = vsel %vm638, %v1446, 0
        %v1544 = vsel %vm638, %v1447, 0
        %v1547 = vsel %vm638, %v1448, 0
        %v1550 = vsel %vm638, %v1449, 0
        %v1553 = vsel %vm638, %v1450, 0
        %v1556 = vsel %vm638, %v1451, 0
        %v1559 = vsel %vm638, %v1452, 0
        %v1562 = vsel %vm638, %v1453, 0
        %1564 = vmatpush.msra.mxu0 0.0
        %1565 = vmatpush.msra.mxu0 0.0
        %1566 = vmatpush.msra.mxu0 0.0
        %1567 = vmatpush.msra.mxu0 0.0
        %1568 = vmatpush.msra.mxu0 0.0
        %1569 = vmatpush.msra.mxu0 0.0
        %1570 = vmatpush.msra.mxu0 0.0
        %1571 = vmatpush.msra.mxu0 0.0
        %1572 = vmatpush.msra.mxu0 0.0
        %1573 = vmatpush.msra.mxu0 0.0
        %1574 = vmatpush.msra.mxu0 0.0
        %1575 = vmatpush.msra.mxu0 0.0
        %1576 = vmatpush.msra.mxu0 %v1460
        %1577 = vmatpush.msra.mxu0 %v1458
        %1578 = vmatpush.msra.mxu0 %v1456
        %1579 = vmatpush.msra.mxu0 %v1454
        %1580 = vmatmul.f32.gmra.mxu0 %v1469
        %v1581 = vpop.f32.mrf.mxu0
        %v1582 = vadd.f32 %v1464, %v1581
        %1583 = vmatmul.f32.gmra.mxu0 %v1472
        %v1584 = vpop.f32.mrf.mxu0
        %v1585 = vadd.f32 %v1464, %v1584
        %1586 = vmatmul.f32.gmra.mxu0 %v1475
        %v1587 = vpop.f32.mrf.mxu0
        %v1588 = vadd.f32 %v1464, %v1587
        %1589 = vmatmul.f32.gmra.mxu0 %v1478
        %v1590 = vpop.f32.mrf.mxu0
        %v1591 = vadd.f32 %v1464, %v1590
        %1592 = vmatmul.f32.gmra.mxu0 %v1481
        %v1593 = vpop.f32.mrf.mxu0
        %v1594 = vadd.f32 %v1464, %v1593
        %1595 = vmatmul.f32.gmra.mxu0 %v1484
        %v1596 = vpop.f32.mrf.mxu0
        %v1597 = vadd.f32 %v1464, %v1596
        %1598 = vmatmul.f32.gmra.mxu0 %v1487
        %v1599 = vpop.f32.mrf.mxu0
        %v1600 = vadd.f32 %v1464, %v1599
        %1601 = vmatmul.f32.gmra.mxu0 %v1490
        %v1602 = vpop.f32.mrf.mxu0
        %v1603 = vadd.f32 %v1464, %v1602
        %1604 = vmatmul.f32.gmra.mxu0 %v1493
        %v1605 = vpop.f32.mrf.mxu0
        %v1606 = vadd.f32 %v1464, %v1605
        %1607 = vmatmul.f32.gmra.mxu0 %v1496
        %v1608 = vpop.f32.mrf.mxu0
        %v1609 = vadd.f32 %v1464, %v1608
        %1610 = vmatmul.f32.gmra.mxu0 %v1499
        %v1611 = vpop.f32.mrf.mxu0
        %v1612 = vadd.f32 %v1464, %v1611
        %1613 = vmatmul.f32.gmra.mxu0 %v1502
        %v1614 = vpop.f32.mrf.mxu0
        %v1615 = vadd.f32 %v1464, %v1614
        %1616 = vmatmul.f32.gmra.mxu0 %v1505
        %v1617 = vpop.f32.mrf.mxu0
        %v1618 = vadd.f32 %v1464, %v1617
        %1619 = vmatmul.f32.gmra.mxu0 %v1508
        %v1620 = vpop.f32.mrf.mxu0
        %v1621 = vadd.f32 %v1464, %v1620
        %1622 = vmatmul.f32.gmra.mxu0 %v1511
        %v1623 = vpop.f32.mrf.mxu0
        %v1624 = vadd.f32 %v1464, %v1623
        %1625 = vmatmul.f32.gmra.mxu0 %v1514
        %v1626 = vpop.f32.mrf.mxu0
        %v1627 = vadd.f32 %v1464, %v1626
        %1628 = vmatmul.f32.gmra.mxu0 %v1517
        %v1629 = vpop.f32.mrf.mxu0
        %v1630 = vadd.f32 %v1464, %v1629
        %1631 = vmatmul.f32.gmra.mxu0 %v1520
        %v1632 = vpop.f32.mrf.mxu0
        %v1633 = vadd.f32 %v1464, %v1632
        %1634 = vmatmul.f32.gmra.mxu0 %v1523
        %v1635 = vpop.f32.mrf.mxu0
        %v1636 = vadd.f32 %v1464, %v1635
        %1637 = vmatmul.f32.gmra.mxu0 %v1526
        %v1638 = vpop.f32.mrf.mxu0
        %v1639 = vadd.f32 %v1464, %v1638
        %1640 = vmatmul.f32.gmra.mxu0 %v1529
        %v1641 = vpop.f32.mrf.mxu0
        %v1642 = vadd.f32 %v1464, %v1641
        %1643 = vmatmul.f32.gmra.mxu0 %v1532
        %v1644 = vpop.f32.mrf.mxu0
        %v1645 = vadd.f32 %v1464, %v1644
        %1646 = vmatmul.f32.gmra.mxu0 %v1535
        %v1647 = vpop.f32.mrf.mxu0
        %v1648 = vadd.f32 %v1464, %v1647
        %1649 = vmatmul.f32.gmra.mxu0 %v1538
        %v1650 = vpop.f32.mrf.mxu0
        %v1651 = vadd.f32 %v1464, %v1650
        %1652 = vmatmul.f32.gmra.mxu0 %v1541
        %v1653 = vpop.f32.mrf.mxu0
        %v1654 = vadd.f32 %v1464, %v1653
        %1655 = vmatmul.f32.gmra.mxu0 %v1544
        %v1656 = vpop.f32.mrf.mxu0
        %v1657 = vadd.f32 %v1464, %v1656
        %1658 = vmatmul.f32.gmra.mxu0 %v1547
        %v1659 = vpop.f32.mrf.mxu0
        %v1660 = vadd.f32 %v1464, %v1659
        %1661 = vmatmul.f32.gmra.mxu0 %v1550
        %v1662 = vpop.f32.mrf.mxu0
        %v1663 = vadd.f32 %v1464, %v1662
        %1664 = vmatmul.f32.gmra.mxu0 %v1553
        %v1665 = vpop.f32.mrf.mxu0
        %v1666 = vadd.f32 %v1464, %v1665
        %1667 = vmatmul.f32.gmra.mxu0 %v1556
        %v1668 = vpop.f32.mrf.mxu0
        %v1669 = vadd.f32 %v1464, %v1668
        %1670 = vmatmul.f32.gmra.mxu0 %v1559
        %v1671 = vpop.f32.mrf.mxu0
        %v1672 = vadd.f32 %v1464, %v1671
        %1673 = vmatmul.f32.gmra.mxu0 %v1562
        %v1674 = vpop.f32.mrf.mxu0
        %v1675 = vadd.f32 %v1464, %v1674
        %1676 = vdwg.mxu0
        %1677 = vmatpush.msra.mxu0 0.0
        %1678 = vmatpush.msra.mxu0 0.0
        %1679 = vmatpush.msra.mxu0 0.0
        %1680 = vmatpush.msra.mxu0 0.0
        %1681 = vmatpush.msra.mxu0 0.0
        %1682 = vmatpush.msra.mxu0 0.0
        %1683 = vmatpush.msra.mxu0 0.0
        %1684 = vmatpush.msra.mxu0 0.0
        %1685 = vmatpush.msra.mxu0 0.0
        %1686 = vmatpush.msra.mxu0 0.0
        %1687 = vmatpush.msra.mxu0 0.0
        %1688 = vmatpush.msra.mxu0 0.0
        %1689 = vmatpush.msra.mxu0 %v1461
        %1690 = vmatpush.msra.mxu0 %v1459
        %1691 = vmatpush.msra.mxu0 %v1457
        %1692 = vmatpush.msra.mxu0 %v1455
        %1693 = vmatmul.f32.gmra.mxu0 %v1469
        %v1694 = vpop.f32.mrf.mxu0
        %v1695 = vadd.f32 %v1465, %v1694
        %1696 = vmatmul.f32.gmra.mxu0 %v1472
        %v1697 = vpop.f32.mrf.mxu0
        %v1698 = vadd.f32 %v1465, %v1697
        %1699 = vmatmul.f32.gmra.mxu0 %v1475
        %v1700 = vpop.f32.mrf.mxu0
        %v1701 = vadd.f32 %v1465, %v1700
        %1702 = vmatmul.f32.gmra.mxu0 %v1478
        %v1703 = vpop.f32.mrf.mxu0
        %v1704 = vadd.f32 %v1465, %v1703
        %1705 = vmatmul.f32.gmra.mxu0 %v1481
        %v1706 = vpop.f32.mrf.mxu0
        %v1707 = vadd.f32 %v1465, %v1706
        %1708 = vmatmul.f32.gmra.mxu0 %v1484
        %v1709 = vpop.f32.mrf.mxu0
        %v1710 = vadd.f32 %v1465, %v1709
        %1711 = vmatmul.f32.gmra.mxu0 %v1487
        %v1712 = vpop.f32.mrf.mxu0
        %v1713 = vadd.f32 %v1465, %v1712
        %1714 = vmatmul.f32.gmra.mxu0 %v1490
        %v1715 = vpop.f32.mrf.mxu0
        %v1716 = vadd.f32 %v1465, %v1715
        %1717 = vmatmul.f32.gmra.mxu0 %v1493
        %v1718 = vpop.f32.mrf.mxu0
        %v1719 = vadd.f32 %v1465, %v1718
        %1720 = vmatmul.f32.gmra.mxu0 %v1496
        %v1721 = vpop.f32.mrf.mxu0
        %v1722 = vadd.f32 %v1465, %v1721
        %1723 = vmatmul.f32.gmra.mxu0 %v1499
        %v1724 = vpop.f32.mrf.mxu0
        %v1725 = vadd.f32 %v1465, %v1724
        %1726 = vmatmul.f32.gmra.mxu0 %v1502
        %v1727 = vpop.f32.mrf.mxu0
        %v1728 = vadd.f32 %v1465, %v1727
        %1729 = vmatmul.f32.gmra.mxu0 %v1505
        %v1730 = vpop.f32.mrf.mxu0
        %v1731 = vadd.f32 %v1465, %v1730
        %1732 = vmatmul.f32.gmra.mxu0 %v1508
        %v1733 = vpop.f32.mrf.mxu0
        %v1734 = vadd.f32 %v1465, %v1733
        %1735 = vmatmul.f32.gmra.mxu0 %v1511
        %v1736 = vpop.f32.mrf.mxu0
        %v1737 = vadd.f32 %v1465, %v1736
        %1738 = vmatmul.f32.gmra.mxu0 %v1514
        %v1739 = vpop.f32.mrf.mxu0
        %v1740 = vadd.f32 %v1465, %v1739
        %1741 = vmatmul.f32.gmra.mxu0 %v1517
        %v1742 = vpop.f32.mrf.mxu0
        %v1743 = vadd.f32 %v1465, %v1742
        %1744 = vmatmul.f32.gmra.mxu0 %v1520
        %v1745 = vpop.f32.mrf.mxu0
        %v1746 = vadd.f32 %v1465, %v1745
        %1747 = vmatmul.f32.gmra.mxu0 %v1523
        %v1748 = vpop.f32.mrf.mxu0
        %v1749 = vadd.f32 %v1465, %v1748
        %1750 = vmatmul.f32.gmra.mxu0 %v1526
        %v1751 = vpop.f32.mrf.mxu0
        %v1752 = vadd.f32 %v1465, %v1751
        %1753 = vmatmul.f32.gmra.mxu0 %v1529
        %v1754 = vpop.f32.mrf.mxu0
        %v1755 = vadd.f32 %v1465, %v1754
        %1756 = vmatmul.f32.gmra.mxu0 %v1532
        %v1757 = vpop.f32.mrf.mxu0
        %v1758 = vadd.f32 %v1465, %v1757
        %1759 = vmatmul.f32.gmra.mxu0 %v1535
        %v1760 = vpop.f32.mrf.mxu0
        %v1761 = vadd.f32 %v1465, %v1760
        %1762 = vmatmul.f32.gmra.mxu0 %v1538
        %v1763 = vpop.f32.mrf.mxu0
        %v1764 = vadd.f32 %v1465, %v1763
        %1765 = vmatmul.f32.gmra.mxu0 %v1541
        %v1766 = vpop.f32.mrf.mxu0
        %v1767 = vadd.f32 %v1465, %v1766
        %1768 = vmatmul.f32.gmra.mxu0 %v1544
        %v1769 = vpop.f32.mrf.mxu0
        %v1770 = vadd.f32 %v1465, %v1769
        %1771 = vmatmul.f32.gmra.mxu0 %v1547
        %v1772 = vpop.f32.mrf.mxu0
        %v1773 = vadd.f32 %v1465, %v1772
        %1774 = vmatmul.f32.gmra.mxu0 %v1550
        %v1775 = vpop.f32.mrf.mxu0
        %v1776 = vadd.f32 %v1465, %v1775
        %1777 = vmatmul.f32.gmra.mxu0 %v1553
        %v1778 = vpop.f32.mrf.mxu0
        %v1779 = vadd.f32 %v1465, %v1778
        %1780 = vmatmul.f32.gmra.mxu0 %v1556
        %v1781 = vpop.f32.mrf.mxu0
        %v1782 = vadd.f32 %v1465, %v1781
        %1783 = vmatmul.f32.gmra.mxu0 %v1559
        %v1784 = vpop.f32.mrf.mxu0
        %v1785 = vadd.f32 %v1465, %v1784
        %1786 = vmatmul.f32.gmra.mxu0 %v1562
        %v1787 = vpop.f32.mrf.mxu0
        %v1788 = vadd.f32 %v1465, %v1787
        %1789 = vdwg.mxu0
        %v1790 = vld [vmem:[%s381] sm:$0xff]
        %v1791 = vld [vmem:[%s381 + $0x8] sm:$0xff]
        %v1792 = vld [vmem:[%s381 + $0x10] sm:$0xff]
        %v1793 = vld [vmem:[%s381 + $0x18] sm:$0xff]
        %v1794 = vld [vmem:[%s381 + $0x20] sm:$0xff]
        %v1795 = vld [vmem:[%s381 + $0x28] sm:$0xff]
        %v1796 = vld [vmem:[%s381 + $0x30] sm:$0xff]
        %v1797 = vld [vmem:[%s381 + $0x38] sm:$0xff]
        %v1798 = vld [vmem:[%s381 + $0x40] sm:$0xff]
        %v1799 = vld [vmem:[%s381 + $0x48] sm:$0xff]
        %v1800 = vld [vmem:[%s381 + $0x50] sm:$0xff]
        %v1801 = vld [vmem:[%s381 + $0x58] sm:$0xff]
        %v1802 = vld [vmem:[%s381 + $0x60] sm:$0xff]
        %v1803 = vld [vmem:[%s381 + $0x68] sm:$0xff]
        %v1804 = vld [vmem:[%s381 + $0x70] sm:$0xff]
        %v1805 = vld [vmem:[%s381 + $0x78] sm:$0xff]
        %v1806 = vld [vmem:[%s381 + $0x80] sm:$0xff]
        %v1807 = vld [vmem:[%s381 + $0x88] sm:$0xff]
        %v1808 = vld [vmem:[%s381 + $0x90] sm:$0xff]
        %v1809 = vld [vmem:[%s381 + $0x98] sm:$0xff]
        %v1810 = vld [vmem:[%s381 + $0xa0] sm:$0xff]
        %v1811 = vld [vmem:[%s381 + $0xa8] sm:$0xff]
        %v1812 = vld [vmem:[%s381 + $0xb0] sm:$0xff]
        %v1813 = vld [vmem:[%s381 + $0xb8] sm:$0xff]
        %v1814 = vld [vmem:[%s381 + $0xc0] sm:$0xff]
        %v1815 = vld [vmem:[%s381 + $0xc8] sm:$0xff]
        %v1816 = vld [vmem:[%s381 + $0xd0] sm:$0xff]
        %v1817 = vld [vmem:[%s381 + $0xd8] sm:$0xff]
        %v1818 = vld [vmem:[%s381 + $0xe0] sm:$0xff]
        %v1819 = vld [vmem:[%s381 + $0xe8] sm:$0xff]
        %v1820 = vld [vmem:[%s381 + $0xf0] sm:$0xff]
        %v1821 = vld [vmem:[%s381 + $0xf8] sm:$0xff]
        %v1822 = vmul.f32 %v1582, %v1790
        %v1823 = vmul.f32 %v1585, %v1791
        %v1824 = vmul.f32 %v1588, %v1792
        %v1825 = vmul.f32 %v1591, %v1793
        %v1826 = vmul.f32 %v1594, %v1794
        %v1827 = vmul.f32 %v1597, %v1795
        %v1828 = vmul.f32 %v1600, %v1796
        %v1829 = vmul.f32 %v1603, %v1797
        %v1830 = vmul.f32 %v1606, %v1798
        %v1831 = vmul.f32 %v1609, %v1799
        %v1832 = vmul.f32 %v1612, %v1800
        %v1833 = vmul.f32 %v1615, %v1801
        %v1834 = vmul.f32 %v1618, %v1802
        %v1835 = vmul.f32 %v1621, %v1803
        %v1836 = vmul.f32 %v1624, %v1804
        %v1837 = vmul.f32 %v1627, %v1805
        %v1838 = vmul.f32 %v1630, %v1806
        %v1839 = vmul.f32 %v1633, %v1807
        %v1840 = vmul.f32 %v1636, %v1808
        %v1841 = vmul.f32 %v1639, %v1809
        %v1842 = vmul.f32 %v1642, %v1810
        %v1843 = vmul.f32 %v1645, %v1811
        %v1844 = vmul.f32 %v1648, %v1812
        %v1845 = vmul.f32 %v1651, %v1813
        %v1846 = vmul.f32 %v1654, %v1814
        %v1847 = vmul.f32 %v1657, %v1815
        %v1848 = vmul.f32 %v1660, %v1816
        %v1849 = vmul.f32 %v1663, %v1817
        %v1850 = vmul.f32 %v1666, %v1818
        %v1851 = vmul.f32 %v1669, %v1819
        %v1852 = vmul.f32 %v1672, %v1820
        %v1853 = vmul.f32 %v1675, %v1821
        %v1854 = vadd.f32 %v1822, %v1695
        %v1855 = vadd.f32 %v1823, %v1698
        %v1856 = vadd.f32 %v1824, %v1701
        %v1857 = vadd.f32 %v1825, %v1704
        %v1858 = vadd.f32 %v1826, %v1707
        %v1859 = vadd.f32 %v1827, %v1710
        %v1860 = vadd.f32 %v1828, %v1713
        %v1861 = vadd.f32 %v1829, %v1716
        %v1862 = vadd.f32 %v1830, %v1719
        %v1863 = vadd.f32 %v1831, %v1722
        %v1864 = vadd.f32 %v1832, %v1725
        %v1865 = vadd.f32 %v1833, %v1728
        %v1866 = vadd.f32 %v1834, %v1731
        %v1867 = vadd.f32 %v1835, %v1734
        %v1868 = vadd.f32 %v1836, %v1737
        %v1869 = vadd.f32 %v1837, %v1740
        %v1870 = vadd.f32 %v1838, %v1743
        %v1871 = vadd.f32 %v1839, %v1746
        %v1872 = vadd.f32 %v1840, %v1749
        %v1873 = vadd.f32 %v1841, %v1752
        %v1874 = vadd.f32 %v1842, %v1755
        %v1875 = vadd.f32 %v1843, %v1758
        %v1876 = vadd.f32 %v1844, %v1761
        %v1877 = vadd.f32 %v1845, %v1764
        %v1878 = vadd.f32 %v1846, %v1767
        %v1879 = vadd.f32 %v1847, %v1770
        %v1880 = vadd.f32 %v1848, %v1773
        %v1881 = vadd.f32 %v1849, %v1776
        %v1882 = vadd.f32 %v1850, %v1779
        %v1883 = vadd.f32 %v1851, %v1782
        %v1884 = vadd.f32 %v1852, %v1785
        %v1885 = vadd.f32 %v1853, %v1788
        %v1886 = vadd.f32 %v1790, %v1854
        %v1887 = vadd.f32 %v1791, %v1855
        %v1888 = vadd.f32 %v1792, %v1856
        %v1889 = vadd.f32 %v1793, %v1857
        %v1890 = vadd.f32 %v1794, %v1858
        %v1891 = vadd.f32 %v1795, %v1859
        %v1892 = vadd.f32 %v1796, %v1860
        %v1893 = vadd.f32 %v1797, %v1861
        %v1894 = vadd.f32 %v1798, %v1862
        %v1895 = vadd.f32 %v1799, %v1863
        %v1896 = vadd.f32 %v1800, %v1864
        %v1897 = vadd.f32 %v1801, %v1865
        %v1898 = vadd.f32 %v1802, %v1866
        %v1899 = vadd.f32 %v1803, %v1867
        %v1900 = vadd.f32 %v1804, %v1868
        %v1901 = vadd.f32 %v1805, %v1869
        %v1902 = vadd.f32 %v1806, %v1870
        %v1903 = vadd.f32 %v1807, %v1871
        %v1904 = vadd.f32 %v1808, %v1872
        %v1905 = vadd.f32 %v1809, %v1873
        %v1906 = vadd.f32 %v1810, %v1874
        %v1907 = vadd.f32 %v1811, %v1875
        %v1908 = vadd.f32 %v1812, %v1876
        %v1909 = vadd.f32 %v1813, %v1877
        %v1910 = vadd.f32 %v1814, %v1878
        %v1911 = vadd.f32 %v1815, %v1879
        %v1912 = vadd.f32 %v1816, %v1880
        %v1913 = vadd.f32 %v1817, %v1881
        %v1914 = vadd.f32 %v1818, %v1882
        %v1915 = vadd.f32 %v1819, %v1883
        %v1916 = vadd.f32 %v1820, %v1884
        %v1917 = vadd.f32 %v1821, %v1885
        %1918 = vst [vmem:[%s376] sm:$0xff] %v1886
        %1919 = vst [vmem:[%s376 + $0x8] sm:$0xff] %v1887
        %1920 = vst [vmem:[%s376 + $0x10] sm:$0xff] %v1888
        %1921 = vst [vmem:[%s376 + $0x18] sm:$0xff] %v1889
        %1922 = vst [vmem:[%s376 + $0x20] sm:$0xff] %v1890
        %1923 = vst [vmem:[%s376 + $0x28] sm:$0xff] %v1891
        %1924 = vst [vmem:[%s376 + $0x30] sm:$0xff] %v1892
        %1925 = vst [vmem:[%s376 + $0x38] sm:$0xff] %v1893
        %1926 = vst [vmem:[%s376 + $0x40] sm:$0xff] %v1894
        %1927 = vst [vmem:[%s376 + $0x48] sm:$0xff] %v1895
        %1928 = vst [vmem:[%s376 + $0x50] sm:$0xff] %v1896
        %1929 = vst [vmem:[%s376 + $0x58] sm:$0xff] %v1897
        %1930 = vst [vmem:[%s376 + $0x60] sm:$0xff] %v1898
        %1931 = vst [vmem:[%s376 + $0x68] sm:$0xff] %v1899
        %1932 = vst [vmem:[%s376 + $0x70] sm:$0xff] %v1900
        %1933 = vst [vmem:[%s376 + $0x78] sm:$0xff] %v1901
        %1934 = vst [vmem:[%s376 + $0x80] sm:$0xff] %v1902
        %1935 = vst [vmem:[%s376 + $0x88] sm:$0xff] %v1903
        %1936 = vst [vmem:[%s376 + $0x90] sm:$0xff] %v1904
        %1937 = vst [vmem:[%s376 + $0x98] sm:$0xff] %v1905
        %1938 = vst [vmem:[%s376 + $0xa0] sm:$0xff] %v1906
        %1939 = vst [vmem:[%s376 + $0xa8] sm:$0xff] %v1907
        %1940 = vst [vmem:[%s376 + $0xb0] sm:$0xff] %v1908
        %1941 = vst [vmem:[%s376 + $0xb8] sm:$0xff] %v1909
        %1942 = vst [vmem:[%s376 + $0xc0] sm:$0xff] %v1910
        %1943 = vst [vmem:[%s376 + $0xc8] sm:$0xff] %v1911
        %1944 = vst [vmem:[%s376 + $0xd0] sm:$0xff] %v1912
        %1945 = vst [vmem:[%s376 + $0xd8] sm:$0xff] %v1913
        %1946 = vst [vmem:[%s376 + $0xe0] sm:$0xff] %v1914
        %1947 = vst [vmem:[%s376 + $0xe8] sm:$0xff] %v1915
        %1948 = vst [vmem:[%s376 + $0xf0] sm:$0xff] %v1916
        %1949 = vst [vmem:[%s376 + $0xf8] sm:$0xff] %v1917
        %s1950 = sand.u32 %s211, 1
        %s1951 = scalar_lea.sflag [#allocation4], %s1950
        %s1952 = sand.u32 %s211, 1
        %s1953 = smul.addr %s1952, 256
        %s1954 = scalar_lea.vmem [#allocation10], %s1953
        // Predicated region
        $region69: #{tpu_custom_call.1} parent=51 // pred_check
          %p1955 = pneg %p221
        $region70: #{tpu_custom_call.1} parent=51 // pred_check_branch
          %1957 = sbr.rel (%p1955) target = $region72
        $region71: #{tpu_custom_call.1} parent=51 // pred_region
          %s1958 = smul.u32 32, %s25
          %1960 = vsyncadd %s1951, 0
          %s1961 = smul.addr %s1958, 8
          %s1962 = scalar_lea.hbm %s8, %s1961
          %s1963 = sshll.u32 %s1954, 4
          %s1964 = int_to_ptr.vmem [resolvable:$true] %s1963
          %s1965 = sshll.u32 %s1962, 4
          %s1966 = int_to_ptr.hbm [resolvable:$true] %s1965
          %1971 = dma.vmem_to_hbm [thread:$0]  %s1964, 4096, %s1966, %s1951, 128, 128, 8
        $region72: #{tpu_custom_call.1} parent=51 // pred_fallthru
          _
      $region52: #{tpu_custom_call.1} parent=5 // pred_fallthru
        _
      %p1972 = scmp.le.s32.totalorder 2, %s20
      // Predicated region
      $region73: #{tpu_custom_call.1} parent=5 // pred_check
        %p1973 = pneg %p1972
      $region74: #{tpu_custom_call.1} parent=5 // pred_check_branch
        %1975 = sbr.rel (%p1973) target = $region76
      $region75: #{tpu_custom_call.1} parent=5 // pred_region
        %s1976 = ssub.s32 %s20, 2
        // Predicated region
        $region77: #{tpu_custom_call.1} parent=75 // pred_check
          %p1977 = pneg %p227
        $region78: #{tpu_custom_call.1} parent=75 // pred_check_branch
          %1979 = sbr.rel (%p1977) target = $region80
        $region79: #{tpu_custom_call.1} parent=75 // pred_region
          %s1980 = sand.u32 %s212, 1
          %s1981 = scalar_lea.sflag [#allocation4], %s1980
          %s1982 = sand.u32 %s212, 1
          %s1983 = smul.addr %s1982, 256
          %s1984 = scalar_lea.vmem [#allocation10], %s1983
          %1986 = dma.done %s1981, 4096
        $region80: #{tpu_custom_call.1} parent=75 // pred_fallthru
          _
      $region76: #{tpu_custom_call.1} parent=5 // pred_fallthru
        _
    $region6: #{tpu_custom_call.1} parent=1 // loop_footer
      %s24 = sadd.s32 1, %s20
    $region7: #{tpu_custom_call.1} parent=1 // loop_footer_branch
      %19 = sbr.rel target = $region3
    $region8: #{tpu_custom_call.1} parent=1 // loop_exit
      _
    %1987 = vsyncpa [#allocation3], 1
    %s1988 = scalar_lea.sflag [#allocation3], 1
    %1989 = vsyncpa %s1988, 1
    %1990 = vsyncpa [#allocation6], 1
    %1991 = vsyncpa [#allocation9], 1
    %1992 = vsyncpa [#allocation4], 1
    %s1993 = scalar_lea.sflag [#allocation4], 1
    %1994 = vsyncpa %s1993, 1

</llo_original>
